<compile_context>
chip_gen: v7x
topology: tpu7x:2x2x1
jax: 0.10.0
libtpu: 0.0.40
codegen_flags: <defaults>
</compile_context>

<pallas_src>
import functools

import numpy as np
import jax
import jax.numpy as jnp
from jax.experimental import pallas as pl
from jax.experimental.pallas import tpu as pltpu

LAYER_DIMS = [30, 60, 120, 240, 512, 28 * 28]   # 5 linear layers
LANE = 128


def _round_up(n, m):
    return ((n + m - 1) // m) * m


# Lane-dense padded feature widths per layer.
PADDED_OUT = [_round_up(d, LANE) for d in LAYER_DIMS[1:]]   # [128, 128, 256, 512, 896]
PADDED_IN = [32] + PADDED_OUT[:-1]                          # [32, 128, 128, 256, 512]
D_OUT = LAYER_DIMS[-1]                                      # 784 (true output width)


def decoder_kernel(x_ref,
                   w1, b1, w2, b2, w3, b3, w4, b4, w5, b5,
                   o_ref):
    """Whole 5-layer MLP for one batch tile; weights + intermediates stay in VMEM."""
    h = x_ref[...].astype(jnp.float32)

    def layer(h, w_ref, b_ref, relu):
        w = w_ref[...]
        # Cast activations to the weight dtype (bf16 path uses the fast MXU
        # mode); always accumulate in f32 on the MXU.
        y = jnp.dot(h.astype(w.dtype), w, preferred_element_type=jnp.float32)
        y = y + b_ref[...].astype(jnp.float32)
        return jnp.maximum(y, 0.0) if relu else y

    h = layer(h, w1, b1, True)
    h = layer(h, w2, b2, True)
    h = layer(h, w3, b3, True)
    h = layer(h, w4, b4, True)
    h = layer(h, w5, b5, False)
    # Store the true 784-wide output directly (only the final 16 lanes of the
    # 7th vreg column become a masked vst) -- no wrapper-side column slice.
    o_ref[...] = jax.nn.sigmoid(h[:, :o_ref.shape[-1]]).astype(o_ref.dtype)


def prepare_params(params, dtype=jnp.bfloat16, first_layer_dtype=jnp.float32):
    """Zero-pad weights/biases once to lane-dense padded shapes.

    bf16 weights/activations are the default (bf16-native MXU on v5e/v6e/v7x);
    layer 1 stays f32 by default so the raw 30-dim input is not quantized.
    Zero-padded columns are inert through Linear+ReLU (bias padded with 0), so
    the math is unchanged.
    """
    padded = []
    for li, (w, b) in enumerate(params):
        dt = first_layer_dtype if li == 0 else dtype
        fi, fo = w.shape
        pi, po = PADDED_IN[li], PADDED_OUT[li]
        w_p = jnp.zeros((pi, po), dt).at[:fi, :fo].set(w.astype(dt))
        b_p = jnp.zeros((1, po), dt).at[:, :fo].set(jnp.reshape(b, (1, fo)).astype(dt))
        padded.append((w_p, b_p))
    return padded


def _pick_batch_tile(B, max_tile=512):
    """>= 2 grid steps once the batch is non-trivial (both v7x TCs busy), with
    big tiles to amortize per-grid-step overhead on single-TC v5e/v6e."""
    if B <= 16:
        return _round_up(B, 8)
    return min(max_tile, _round_up((B + 1) // 2, 8))


@functools.partial(jax.jit, static_argnames=("batch_tile", "out_dtype"))
def decoder_forward(x, padded_params, *, batch_tile=None, out_dtype=jnp.float32):
    """x: (B, 30) float32.  padded_params: output of prepare_params()."""
    B, d_in = x.shape
    assert d_in == LAYER_DIMS[0]
    d_in_pad = PADDED_IN[0]

    if batch_tile is None:
        batch_tile = _pick_batch_tile(B)
    assert batch_tile % 8 == 0

    # Pad ragged batch rows and the 30 -> 32 input columns in one shot.
    B_pad = _round_up(B, batch_tile)
    x = jnp.pad(x, ((0, B_pad - B), (0, d_in_pad - d_in)))

    flat_params = []
    in_specs = [pl.BlockSpec((batch_tile, d_in_pad), lambda i: (i, 0))]
    for (w, b) in padded_params:
        flat_params += [w, b]
        # Full-array blocks with a constant index_map: weights/biases are DMA'd
        # once and stay resident in VMEM across all grid steps.
        in_specs.append(pl.BlockSpec(w.shape, lambda i: (0, 0)))
        in_specs.append(pl.BlockSpec(b.shape, lambda i: (0, 0)))

    weight_bytes = sum(w.size * w.dtype.itemsize + b.size * b.dtype.itemsize
                       for w, b in padded_params)
    cost = pl.CostEstimate(
        flops=2 * B_pad * sum(ki * ko for ki, ko in zip(PADDED_IN, PADDED_OUT)),
        transcendentals=B_pad * D_OUT,
        bytes_accessed=(B_pad * d_in_pad * x.dtype.itemsize
                        + weight_bytes
                        + B_pad * D_OUT * np.dtype(out_dtype).itemsize),
    )

    out = pl.pallas_call(
        decoder_kernel,
        # True 784-wide output: no post-kernel column slice / extra HBM pass.
        out_shape=jax.ShapeDtypeStruct((B_pad, D_OUT), out_dtype),
        grid_spec=pltpu.PrefetchScalarGridSpec(
            num_scalar_prefetch=0,
            grid=(B_pad // batch_tile,),
            in_specs=in_specs,
            out_specs=pl.BlockSpec((batch_tile, D_OUT), lambda i: (i, 0)),
        ),
        compiler_params=pltpu.CompilerParams(
            dimension_semantics=("parallel",),
            # ~10-15 MB actually used at tile <= 512; 48 MiB leaves headroom on
            # all chips while staying under v7x's 64 MiB physical VMEM per TC.
            vmem_limit_bytes=48 * 1024 * 1024,
        ),
        cost_estimate=cost,
    )(x, *flat_params)

    # Only the padded rows need slicing off (padded rows hold sigmoid(bias)).
    return out if B_pad == B else out[:B]


def init_params(key):
    """Deterministic init mimicking nn.Linear defaults (U(-1/sqrt(in), +1/sqrt(in)))."""
    params = []
    for li in range(len(LAYER_DIMS) - 1):
        fan_in, fan_out = LAYER_DIMS[li], LAYER_DIMS[li + 1]
        key, kw, kb = jax.random.split(key, 3)
        bound = 1.0 / jnp.sqrt(fan_in)
        w = jax.random.uniform(kw, (fan_in, fan_out), jnp.float32, -bound, bound)
        b = jax.random.uniform(kb, (1, fan_out), jnp.float32, -bound, bound)
        params.append((w, b))
    return params


def reference_forward(x, params):
    h = x
    for li, (w, b) in enumerate(params):
        h = h @ w + b
        if li < len(params) - 1:
            h = jnp.maximum(h, 0.0)
        else:
            h = jax.nn.sigmoid(h)
    return h


if __name__ == "__main__":
    key = jax.random.PRNGKey(0)
    kx1, kx2, kp = jax.random.split(key, 3)

    params = init_params(kp)

    # --- exact-math check: all-f32 weights, small batch, tight tolerance. ---
    B1 = 64
    x1 = jax.random.normal(kx1, (B1, LAYER_DIMS[0]), jnp.float32)
    params_f32 = prepare_params(params, dtype=jnp.float32)
    out1 = jax.block_until_ready(decoder_forward(x1, params_f32))
    ref1 = reference_forward(x1, params)
    assert out1.shape == (B1, 28 * 28)
    assert jnp.allclose(out1, ref1, atol=1e-5, rtol=1e-5), "f32 mismatch vs reference"

    # --- default fast path: bf16 weights/activations (layer 1 kept f32),
    #     ragged batch padded internally, f32 output. ---
    B2 = 37
    x2 = jax.random.normal(kx2, (B2, LAYER_DIMS[0]), jnp.float32)
    params_bf16 = prepare_params(params)          # bf16 default
    out2 = jax.block_until_ready(decoder_forward(x2, params_bf16))
    ref2 = reference_forward(x2, params)
    assert out2.shape == (B2, 28 * 28)
    assert jnp.allclose(out2, ref2, atol=3e-2, rtol=0.0), "bf16 mismatch vs reference"

    print("KERNEL_OK")
</pallas_src>

<mosaic_0001>
module attributes {stable_mosaic.version = 11 : i64} {
  func.func @decoder_kernel(%arg0: i32, %arg1: memref<32x32xf32, #tpu.memory_space<vmem>>, %arg2: memref<32x128xf32, #tpu.memory_space<vmem>>, %arg3: memref<1x128xf32, #tpu.memory_space<vmem>>, %arg4: memref<128x128xf32, #tpu.memory_space<vmem>>, %arg5: memref<1x128xf32, #tpu.memory_space<vmem>>, %arg6: memref<128x256xf32, #tpu.memory_space<vmem>>, %arg7: memref<1x256xf32, #tpu.memory_space<vmem>>, %arg8: memref<256x512xf32, #tpu.memory_space<vmem>>, %arg9: memref<1x512xf32, #tpu.memory_space<vmem>>, %arg10: memref<512x896xf32, #tpu.memory_space<vmem>>, %arg11: memref<1x896xf32, #tpu.memory_space<vmem>>, %arg12: memref<32x784xf32, #tpu.memory_space<vmem>>) attributes {dimension_semantics = [#tpu.dimension_semantics<parallel>], iteration_bounds = array<i64: 2>, scalar_prefetch = 0 : i64, scratch_operands = 0 : i64, tpu.core_type = #tpu.core_type<tc>, window_params = [{transform_indices = @transform_0, window_bounds = array<i64: 32, 32>}, {pipeline_mode = #tpu.pipeline_mode<synchronous>, transform_indices = @transform_1, window_bounds = array<i64: 32, 128>}, {pipeline_mode = #tpu.pipeline_mode<synchronous>, transform_indices = @transform_2, window_bounds = array<i64: 1, 128>}, {pipeline_mode = #tpu.pipeline_mode<synchronous>, transform_indices = @transform_3, window_bounds = array<i64: 128, 128>}, {pipeline_mode = #tpu.pipeline_mode<synchronous>, transform_indices = @transform_4, window_bounds = array<i64: 1, 128>}, {pipeline_mode = #tpu.pipeline_mode<synchronous>, transform_indices = @transform_5, window_bounds = array<i64: 128, 256>}, {pipeline_mode = #tpu.pipeline_mode<synchronous>, transform_indices = @transform_6, window_bounds = array<i64: 1, 256>}, {pipeline_mode = #tpu.pipeline_mode<synchronous>, transform_indices = @transform_7, window_bounds = array<i64: 256, 512>}, {pipeline_mode = #tpu.pipeline_mode<synchronous>, transform_indices = @transform_8, window_bounds = array<i64: 1, 512>}, {pipeline_mode = #tpu.pipeline_mode<synchronous>, transform_indices = @transform_9, window_bounds = array<i64: 512, 896>}, {pipeline_mode = #tpu.pipeline_mode<synchronous>, transform_indices = @transform_10, window_bounds = array<i64: 1, 896>}, {transform_indices = @transform_11, window_bounds = array<i64: 32, 784>}]} {
    %c0 = arith.constant 0 : index
    %c0_0 = arith.constant 0 : index
    %0 = vector.load %arg1[%c0, %c0_0] : memref<32x32xf32, #tpu.memory_space<vmem>>, vector<32x32xf32>
    %c0_1 = arith.constant 0 : index
    %c0_2 = arith.constant 0 : index
    %1 = vector.load %arg2[%c0_1, %c0_2] : memref<32x128xf32, #tpu.memory_space<vmem>>, vector<32x128xf32>
    %cst = arith.constant dense<0.000000e+00> : vector<32x128xf32>
    %2 = tpu.matmul %0, %1, %cst {dimension_numbers = #tpu.dot_dimension_numbers<[1], [0], [0], [1], [0, 0, 1, 1], [], []>} : vector<32x32xf32>, vector<32x128xf32>, vector<32x128xf32> -> vector<32x128xf32>
    %c0_3 = arith.constant 0 : index
    %c0_4 = arith.constant 0 : index
    %3 = vector.load %arg3[%c0_3, %c0_4] : memref<1x128xf32, #tpu.memory_space<vmem>>, vector<1x128xf32>
    %4 = vector.broadcast %3 : vector<1x128xf32> to vector<32x128xf32>
    %5 = arith.addf %2, %4 : vector<32x128xf32>
    %cst_5 = arith.constant 0.000000e+00 : f32
    %6 = vector.broadcast %cst_5 : f32 to vector<32x128xf32>
    %7 = arith.maximumf %5, %6 : vector<32x128xf32>
    %c0_6 = arith.constant 0 : index
    %c0_7 = arith.constant 0 : index
    %8 = vector.load %arg4[%c0_6, %c0_7] : memref<128x128xf32, #tpu.memory_space<vmem>>, vector<128x128xf32>
    %cst_8 = arith.constant dense<0.000000e+00> : vector<32x128xf32>
    %9 = tpu.matmul %7, %8, %cst_8 {dimension_numbers = #tpu.dot_dimension_numbers<[1], [0], [0], [1], [0, 0, 1, 1], [], []>} : vector<32x128xf32>, vector<128x128xf32>, vector<32x128xf32> -> vector<32x128xf32>
    %c0_9 = arith.constant 0 : index
    %c0_10 = arith.constant 0 : index
    %10 = vector.load %arg5[%c0_9, %c0_10] : memref<1x128xf32, #tpu.memory_space<vmem>>, vector<1x128xf32>
    %11 = vector.broadcast %10 : vector<1x128xf32> to vector<32x128xf32>
    %12 = arith.addf %9, %11 : vector<32x128xf32>
    %cst_11 = arith.constant 0.000000e+00 : f32
    %13 = vector.broadcast %cst_11 : f32 to vector<32x128xf32>
    %14 = arith.maximumf %12, %13 : vector<32x128xf32>
    %c0_12 = arith.constant 0 : index
    %c0_13 = arith.constant 0 : index
    %15 = vector.load %arg6[%c0_12, %c0_13] : memref<128x256xf32, #tpu.memory_space<vmem>>, vector<128x256xf32>
    %cst_14 = arith.constant dense<0.000000e+00> : vector<32x256xf32>
    %16 = tpu.matmul %14, %15, %cst_14 {dimension_numbers = #tpu.dot_dimension_numbers<[1], [0], [0], [1], [0, 0, 1, 1], [], []>} : vector<32x128xf32>, vector<128x256xf32>, vector<32x256xf32> -> vector<32x256xf32>
    %c0_15 = arith.constant 0 : index
    %c0_16 = arith.constant 0 : index
    %17 = vector.load %arg7[%c0_15, %c0_16] : memref<1x256xf32, #tpu.memory_space<vmem>>, vector<1x256xf32>
    %18 = vector.broadcast %17 : vector<1x256xf32> to vector<32x256xf32>
    %19 = arith.addf %16, %18 : vector<32x256xf32>
    %cst_17 = arith.constant 0.000000e+00 : f32
    %20 = vector.broadcast %cst_17 : f32 to vector<32x256xf32>
    %21 = arith.maximumf %19, %20 : vector<32x256xf32>
    %c0_18 = arith.constant 0 : index
    %c0_19 = arith.constant 0 : index
    %22 = vector.load %arg8[%c0_18, %c0_19] : memref<256x512xf32, #tpu.memory_space<vmem>>, vector<256x512xf32>
    %cst_20 = arith.constant dense<0.000000e+00> : vector<32x512xf32>
    %23 = tpu.matmul %21, %22, %cst_20 {dimension_numbers = #tpu.dot_dimension_numbers<[1], [0], [0], [1], [0, 0, 1, 1], [], []>} : vector<32x256xf32>, vector<256x512xf32>, vector<32x512xf32> -> vector<32x512xf32>
    %c0_21 = arith.constant 0 : index
    %c0_22 = arith.constant 0 : index
    %24 = vector.load %arg9[%c0_21, %c0_22] : memref<1x512xf32, #tpu.memory_space<vmem>>, vector<1x512xf32>
    %25 = vector.broadcast %24 : vector<1x512xf32> to vector<32x512xf32>
    %26 = arith.addf %23, %25 : vector<32x512xf32>
    %cst_23 = arith.constant 0.000000e+00 : f32
    %27 = vector.broadcast %cst_23 : f32 to vector<32x512xf32>
    %28 = arith.maximumf %26, %27 : vector<32x512xf32>
    %c0_24 = arith.constant 0 : index
    %c0_25 = arith.constant 0 : index
    %29 = vector.load %arg10[%c0_24, %c0_25] : memref<512x896xf32, #tpu.memory_space<vmem>>, vector<512x896xf32>
    %cst_26 = arith.constant dense<0.000000e+00> : vector<32x896xf32>
    %30 = tpu.matmul %28, %29, %cst_26 {dimension_numbers = #tpu.dot_dimension_numbers<[1], [0], [0], [1], [0, 0, 1, 1], [], []>} : vector<32x512xf32>, vector<512x896xf32>, vector<32x896xf32> -> vector<32x896xf32>
    %c0_27 = arith.constant 0 : index
    %c0_28 = arith.constant 0 : index
    %31 = vector.load %arg11[%c0_27, %c0_28] : memref<1x896xf32, #tpu.memory_space<vmem>>, vector<1x896xf32>
    %32 = vector.broadcast %31 : vector<1x896xf32> to vector<32x896xf32>
    %33 = arith.addf %30, %32 : vector<32x896xf32>
    %34 = vector.extract_strided_slice %33 {offsets = [0, 0], sizes = [32, 784], strides = [1, 1]} : vector<32x896xf32> to vector<32x784xf32>
    %35 = arith.negf %34 : vector<32x784xf32>
    %36 = math.exp %35 : vector<32x784xf32>
    %cst_29 = arith.constant 1.000000e+00 : f32
    %37 = vector.broadcast %cst_29 : f32 to vector<32x784xf32>
    %38 = arith.addf %37, %36 : vector<32x784xf32>
    %39 = arith.divf %37, %38 : vector<32x784xf32>
    %c0_30 = arith.constant 0 : index
    %c0_31 = arith.constant 0 : index
    %40 = vector.load %arg12[%c0_30, %c0_31] : memref<32x784xf32, #tpu.memory_space<vmem>>, vector<32x784xf32>
    tpu.vector_store %arg12[%c0_30, %c0_31], %39 {strides = array<i32>} : memref<32x784xf32, #tpu.memory_space<vmem>>, vector<32x784xf32>,
    return
  }
  func.func @transform_0(%arg0: i32) -> (i32, i32) {
    %c0_i32 = arith.constant 0 : i32
    %c0_i32_0 = arith.constant 0 : i32
    return %arg0, %c0_i32 : i32, i32
  }
  func.func @transform_1(%arg0: i32) -> (i32, i32) {
    %c0_i32 = arith.constant 0 : i32
    %c0_i32_0 = arith.constant 0 : i32
    %c0_i32_1 = arith.constant 0 : i32
    return %c0_i32, %c0_i32_0 : i32, i32
  }
  func.func @transform_2(%arg0: i32) -> (i32, i32) {
    %c0_i32 = arith.constant 0 : i32
    %c0_i32_0 = arith.constant 0 : i32
    %c0_i32_1 = arith.constant 0 : i32
    return %c0_i32, %c0_i32_0 : i32, i32
  }
  func.func @transform_3(%arg0: i32) -> (i32, i32) {
    %c0_i32 = arith.constant 0 : i32
    %c0_i32_0 = arith.constant 0 : i32
    %c0_i32_1 = arith.constant 0 : i32
    return %c0_i32, %c0_i32_0 : i32, i32
  }
  func.func @transform_4(%arg0: i32) -> (i32, i32) {
    %c0_i32 = arith.constant 0 : i32
    %c0_i32_0 = arith.constant 0 : i32
    %c0_i32_1 = arith.constant 0 : i32
    return %c0_i32, %c0_i32_0 : i32, i32
  }
  func.func @transform_5(%arg0: i32) -> (i32, i32) {
    %c0_i32 = arith.constant 0 : i32
    %c0_i32_0 = arith.constant 0 : i32
    %c0_i32_1 = arith.constant 0 : i32
    return %c0_i32, %c0_i32_0 : i32, i32
  }
  func.func @transform_6(%arg0: i32) -> (i32, i32) {
    %c0_i32 = arith.constant 0 : i32
    %c0_i32_0 = arith.constant 0 : i32
    %c0_i32_1 = arith.constant 0 : i32
    return %c0_i32, %c0_i32_0 : i32, i32
  }
  func.func @transform_7(%arg0: i32) -> (i32, i32) {
    %c0_i32 = arith.constant 0 : i32
    %c0_i32_0 = arith.constant 0 : i32
    %c0_i32_1 = arith.constant 0 : i32
    return %c0_i32, %c0_i32_0 : i32, i32
  }
  func.func @transform_8(%arg0: i32) -> (i32, i32) {
    %c0_i32 = arith.constant 0 : i32
    %c0_i32_0 = arith.constant 0 : i32
    %c0_i32_1 = arith.constant 0 : i32
    return %c0_i32, %c0_i32_0 : i32, i32
  }
  func.func @transform_9(%arg0: i32) -> (i32, i32) {
    %c0_i32 = arith.constant 0 : i32
    %c0_i32_0 = arith.constant 0 : i32
    %c0_i32_1 = arith.constant 0 : i32
    return %c0_i32, %c0_i32_0 : i32, i32
  }
  func.func @transform_10(%arg0: i32) -> (i32, i32) {
    %c0_i32 = arith.constant 0 : i32
    %c0_i32_0 = arith.constant 0 : i32
    %c0_i32_1 = arith.constant 0 : i32
    return %c0_i32, %c0_i32_0 : i32, i32
  }
  func.func @transform_11(%arg0: i32) -> (i32, i32) {
    %c0_i32 = arith.constant 0 : i32
    %c0_i32_0 = arith.constant 0 : i32
    return %arg0, %c0_i32 : i32, i32
  }
}

</mosaic_0001>

<llo_original>
// kernel: decoder_forward.1
$region0: #{decoder_forward.1}
  #allocation0 [shape = 'u32[]', space=smem, size = 0x4, offset = 0x4, fixed_abs, tag = 'smem constant byte address 0x4 - core index']
  #allocation1 [shape = 'u32[144,128]{1,0:T(1,128)}', space=vmem, size = 0x12000, scoped, tag = 'internal scratch']
  %s0 = inlined_call_operand.vmem [shape: f32[64,32], index: 0, kind: input, shape index: {}]
  %s1 = inlined_call_operand.hbm [shape: f32[32,128], index: 1, kind: input, shape index: {}]
  %s2 = inlined_call_operand.hbm [shape: f32[1,128], index: 2, kind: input, shape index: {}]
  %s3 = inlined_call_operand.hbm [shape: f32[128,128], index: 3, kind: input, shape index: {}]
  %s4 = inlined_call_operand.hbm [shape: f32[1,128], index: 4, kind: input, shape index: {}]
  %s5 = inlined_call_operand.hbm [shape: f32[128,256], index: 5, kind: input, shape index: {}]
  %s6 = inlined_call_operand.hbm [shape: f32[1,256], index: 6, kind: input, shape index: {}]
  %s7 = inlined_call_operand.hbm [shape: f32[256,512], index: 7, kind: input, shape index: {}]
  %s8 = inlined_call_operand.hbm [shape: f32[1,512], index: 8, kind: input, shape index: {}]
  %s9 = inlined_call_operand.hbm [shape: f32[512,896], index: 9, kind: input, shape index: {}]
  %s10 = inlined_call_operand.hbm [shape: f32[1,896], index: 10, kind: input, shape index: {}]
  %s11 = inlined_call_operand.hbm [shape: f32[64,784], index: 11, kind: output, shape index: {}]
  %s12 = sld [smem:[#allocation0]]
  $region117: #{decoder_forward.1} parent=0
    _
  %s14 = ssub.s32 1, %s12
  %s15 = scalar_select 0, %s14, %s12
  $region1: #{decoder_forward.1} parent=0
    #allocation2 [shape = 'u8[16384]{0}', space=vmem, size = 0x4000, scoped, tag = 'input window, operand 1, single buffered']
    #allocation3 [shape = 's32[2]{0}', space=sflag, size = 0x8, scoped, tag = 'scoped memory for decoder_forward.1']
    #allocation4 [shape = 's32[2]{0}', space=sflag, size = 0x8, scoped, tag = 'scoped memory for decoder_forward.1']
    #allocation5 [shape = 'u8[512]{0}', space=vmem, size = 0x400, scoped, tag = 'input window, operand 2, single buffered']
    #allocation6 [shape = 's32[1]{0}', space=sflag, size = 0x4, scoped, tag = 'scoped memory for decoder_forward.1']
    #allocation7 [shape = 'u8[65536]{0}', space=vmem, size = 0x10000, scoped, tag = 'input window, operand 3, single buffered']
    #allocation8 [shape = 'u8[512]{0}', space=vmem, size = 0x400, scoped, tag = 'input window, operand 4, single buffered']
    #allocation9 [shape = 's32[1]{0}', space=sflag, size = 0x4, scoped, tag = 'scoped memory for decoder_forward.1']
    #allocation10 [shape = 'u8[131072]{0}', space=vmem, size = 0x20000, scoped, tag = 'input window, operand 5, single buffered']
    #allocation11 [shape = 'u8[1024]{0}', space=vmem, size = 0x400, scoped, tag = 'input window, operand 6, single buffered']
    #allocation12 [shape = 's32[1]{0}', space=sflag, size = 0x4, scoped, tag = 'scoped memory for decoder_forward.1']
    #allocation13 [shape = 'u8[524288]{0}', space=vmem, size = 0x80000, scoped, tag = 'input window, operand 7, single buffered']
    #allocation14 [shape = 'u8[2048]{0}', space=vmem, size = 0x800, scoped, tag = 'input window, operand 8, single buffered']
    #allocation15 [shape = 's32[1]{0}', space=sflag, size = 0x4, scoped, tag = 'scoped memory for decoder_forward.1']
    #allocation16 [shape = 'u8[1835008]{0}', space=vmem, size = 0x1c0000, scoped, tag = 'input window, operand 9, single buffered']
    #allocation17 [shape = 'u8[3584]{0}', space=vmem, size = 0x1000, scoped, tag = 'input window, operand 10, single buffered']
    #allocation18 [shape = 's32[1]{0}', space=sflag, size = 0x4, scoped, tag = 'scoped memory for decoder_forward.1']
    #allocation19 [shape = 'u8[229376]{0}', space=vmem, size = 0x38000, scoped, tag = 'output window, operand 0']
    %16 = vsyncpa [#allocation3], 0
    %17 = vsyncpa [#allocation6], 0
    %18 = vsyncpa [#allocation9], 0
    %19 = vsyncpa [#allocation12], 0
    %20 = vsyncpa [#allocation15], 0
    %21 = vsyncpa [#allocation18], 0
    %22 = vsyncpa [#allocation4], 0
    %s23 = scalar_lea.sflag [#allocation4], 1
    %24 = vsyncpa %s23, 0
    loop: start=0, step=1, limit=4
    $region2: #{decoder_forward.1} parent=1 // loop_pre_header
      _
    $region3: #{decoder_forward.1} parent=1 // loop_header
      %s26 = sphi 0, %s30
      %p27 = scmp.ge.s32.totalorder %s26, 4
      %s36 = sphi 0, %s38
      %s39 = sphi 0, %s36
      %s40 = sphi 0, %s39
      %s56 = sphi 0, %s40
      %s60 = sphi 0, %s60
      %s62 = sphi 0, %s60
      %s63 = sphi 0, %s62
      %s77 = sphi 0, %s63
      %s81 = sphi 0, %s81
      %s83 = sphi 0, %s81
      %s84 = sphi 0, %s83
      %s98 = sphi 0, %s84
      %s102 = sphi 0, %s102
      %s104 = sphi 0, %s102
      %s105 = sphi 0, %s104
      %s119 = sphi 0, %s105
      %s123 = sphi 0, %s123
      %s125 = sphi 0, %s123
      %s126 = sphi 0, %s125
      %s140 = sphi 0, %s126
      %s144 = sphi 0, %s144
      %s146 = sphi 0, %s144
      %s147 = sphi 0, %s146
      %s161 = sphi 0, %s147
      %s165 = sphi 0, %s165
      %s167 = sphi 0, %s165
      %s168 = sphi 0, %s167
      %s182 = sphi 0, %s168
      %s186 = sphi 0, %s186
      %s188 = sphi 0, %s186
      %s189 = sphi 0, %s188
      %s203 = sphi 0, %s189
      %s207 = sphi 0, %s207
      %s209 = sphi 0, %s207
      %s210 = sphi 0, %s209
      %s224 = sphi 0, %s210
      %s228 = sphi 0, %s228
      %s230 = sphi 0, %s228
      %s231 = sphi 0, %s230
      %s245 = sphi 0, %s231
      %s249 = sphi 0, %s249
      %s251 = sphi 0, %s249
      %s252 = sphi 0, %s251
      %s266 = sphi 0, %s252
      %s272 = sphi 0, %s274
      %s275 = sphi 0, %s272
      %s276 = sphi 0, %s275
      %s292 = sphi 0, %s276
    $region4: #{decoder_forward.1} parent=1 // loop_header_branch
      %29 = sbr.rel (%p27) target = $region8
    $region5: #{decoder_forward.1} parent=1 // loop_body
      %s31 = ssub.s32 %s26, 1
      %s32 = ssub.s32 %s26, 2
      %s33 = sadd.s32 %s26, 1
      %s34 = ssub.s32 %s26, %s33
      %p35 = scmp.eq.s32.totalorder %s34, 0
      %s37 = sadd.s32 %s36, 1
      %s38 = scalar_select %p35, %s36, %s37
      %p41 = pneg %p35
      %p42 = scmp.eq.s32.totalorder %s26, 1
      %p43 = por %p41, %p42
      %p44 = scmp.ne.s32.totalorder %s36, %s39
      %p45 = scmp.eq.s32.totalorder %s26, 0
      %p46 = por %p44, %p45
      %p47 = scmp.ne.s32.totalorder %s36, %s39
      %p48 = scmp.eq.s32.totalorder %s31, 1
      %p49 = por %p47, %p48
      %p50 = scmp.ne.s32.totalorder %s39, %s40
      %p51 = scmp.eq.s32.totalorder %s31, 0
      %p52 = por %p50, %p51
      %p53 = scmp.ne.s32.totalorder %s39, %s40
      %p54 = scmp.eq.s32.totalorder %s32, 1
      %p55 = por %p53, %p54
      %p57 = scmp.ne.s32.totalorder %s40, %s56
      %p58 = scmp.eq.s32.totalorder %s32, 0
      %p59 = por %p57, %p58
      %s61 = sadd.s32 %s60, 1
      %p64 = scmp.eq.s32.totalorder %s26, 1
      %p65 = scmp.ne.s32.totalorder %s60, %s62
      %p66 = scmp.eq.s32.totalorder %s26, 0
      %p67 = por %p65, %p66
      %p68 = scmp.ne.s32.totalorder %s60, %s62
      %p69 = scmp.eq.s32.totalorder %s31, 1
      %p70 = por %p68, %p69
      %p71 = scmp.ne.s32.totalorder %s62, %s63
      %p72 = scmp.eq.s32.totalorder %s31, 0
      %p73 = por %p71, %p72
      %p74 = scmp.ne.s32.totalorder %s62, %s63
      %p75 = scmp.eq.s32.totalorder %s32, 1
      %p76 = por %p74, %p75
      %p78 = scmp.ne.s32.totalorder %s63, %s77
      %p79 = scmp.eq.s32.totalorder %s32, 0
      %p80 = por %p78, %p79
      %s82 = sadd.s32 %s81, 1
      %p85 = scmp.eq.s32.totalorder %s26, 1
      %p86 = scmp.ne.s32.totalorder %s81, %s83
      %p87 = scmp.eq.s32.totalorder %s26, 0
      %p88 = por %p86, %p87
      %p89 = scmp.ne.s32.totalorder %s81, %s83
      %p90 = scmp.eq.s32.totalorder %s31, 1
      %p91 = por %p89, %p90
      %p92 = scmp.ne.s32.totalorder %s83, %s84
      %p93 = scmp.eq.s32.totalorder %s31, 0
      %p94 = por %p92, %p93
      %p95 = scmp.ne.s32.totalorder %s83, %s84
      %p96 = scmp.eq.s32.totalorder %s32, 1
      %p97 = por %p95, %p96
      %p99 = scmp.ne.s32.totalorder %s84, %s98
      %p100 = scmp.eq.s32.totalorder %s32, 0
      %p101 = por %p99, %p100
      %s103 = sadd.s32 %s102, 1
      %p106 = scmp.eq.s32.totalorder %s26, 1
      %p107 = scmp.ne.s32.totalorder %s102, %s104
      %p108 = scmp.eq.s32.totalorder %s26, 0
      %p109 = por %p107, %p108
      %p110 = scmp.ne.s32.totalorder %s102, %s104
      %p111 = scmp.eq.s32.totalorder %s31, 1
      %p112 = por %p110, %p111
      %p113 = scmp.ne.s32.totalorder %s104, %s105
      %p114 = scmp.eq.s32.totalorder %s31, 0
      %p115 = por %p113, %p114
      %p116 = scmp.ne.s32.totalorder %s104, %s105
      %p117 = scmp.eq.s32.totalorder %s32, 1
      %p118 = por %p116, %p117
      %p120 = scmp.ne.s32.totalorder %s105, %s119
      %p121 = scmp.eq.s32.totalorder %s32, 0
      %p122 = por %p120, %p121
      %s124 = sadd.s32 %s123, 1
      %p127 = scmp.eq.s32.totalorder %s26, 1
      %p128 = scmp.ne.s32.totalorder %s123, %s125
      %p129 = scmp.eq.s32.totalorder %s26, 0
      %p130 = por %p128, %p129
      %p131 = scmp.ne.s32.totalorder %s123, %s125
      %p132 = scmp.eq.s32.totalorder %s31, 1
      %p133 = por %p131, %p132
      %p134 = scmp.ne.s32.totalorder %s125, %s126
      %p135 = scmp.eq.s32.totalorder %s31, 0
      %p136 = por %p134, %p135
      %p137 = scmp.ne.s32.totalorder %s125, %s126
      %p138 = scmp.eq.s32.totalorder %s32, 1
      %p139 = por %p137, %p138
      %p141 = scmp.ne.s32.totalorder %s126, %s140
      %p142 = scmp.eq.s32.totalorder %s32, 0
      %p143 = por %p141, %p142
      %s145 = sadd.s32 %s144, 1
      %p148 = scmp.eq.s32.totalorder %s26, 1
      %p149 = scmp.ne.s32.totalorder %s144, %s146
      %p150 = scmp.eq.s32.totalorder %s26, 0
      %p151 = por %p149, %p150
      %p152 = scmp.ne.s32.totalorder %s144, %s146
      %p153 = scmp.eq.s32.totalorder %s31, 1
      %p154 = por %p152, %p153
      %p155 = scmp.ne.s32.totalorder %s146, %s147
      %p156 = scmp.eq.s32.totalorder %s31, 0
      %p157 = por %p155, %p156
      %p158 = scmp.ne.s32.totalorder %s146, %s147
      %p159 = scmp.eq.s32.totalorder %s32, 1
      %p160 = por %p158, %p159
      %p162 = scmp.ne.s32.totalorder %s147, %s161
      %p163 = scmp.eq.s32.totalorder %s32, 0
      %p164 = por %p162, %p163
      %s166 = sadd.s32 %s165, 1
      %p169 = scmp.eq.s32.totalorder %s26, 1
      %p170 = scmp.ne.s32.totalorder %s165, %s167
      %p171 = scmp.eq.s32.totalorder %s26, 0
      %p172 = por %p170, %p171
      %p173 = scmp.ne.s32.totalorder %s165, %s167
      %p174 = scmp.eq.s32.totalorder %s31, 1
      %p175 = por %p173, %p174
      %p176 = scmp.ne.s32.totalorder %s167, %s168
      %p177 = scmp.eq.s32.totalorder %s31, 0
      %p178 = por %p176, %p177
      %p179 = scmp.ne.s32.totalorder %s167, %s168
      %p180 = scmp.eq.s32.totalorder %s32, 1
      %p181 = por %p179, %p180
      %p183 = scmp.ne.s32.totalorder %s168, %s182
      %p184 = scmp.eq.s32.totalorder %s32, 0
      %p185 = por %p183, %p184
      %s187 = sadd.s32 %s186, 1
      %p190 = scmp.eq.s32.totalorder %s26, 1
      %p191 = scmp.ne.s32.totalorder %s186, %s188
      %p192 = scmp.eq.s32.totalorder %s26, 0
      %p193 = por %p191, %p192
      %p194 = scmp.ne.s32.totalorder %s186, %s188
      %p195 = scmp.eq.s32.totalorder %s31, 1
      %p196 = por %p194, %p195
      %p197 = scmp.ne.s32.totalorder %s188, %s189
      %p198 = scmp.eq.s32.totalorder %s31, 0
      %p199 = por %p197, %p198
      %p200 = scmp.ne.s32.totalorder %s188, %s189
      %p201 = scmp.eq.s32.totalorder %s32, 1
      %p202 = por %p200, %p201
      %p204 = scmp.ne.s32.totalorder %s189, %s203
      %p205 = scmp.eq.s32.totalorder %s32, 0
      %p206 = por %p204, %p205
      %s208 = sadd.s32 %s207, 1
      %p211 = scmp.eq.s32.totalorder %s26, 1
      %p212 = scmp.ne.s32.totalorder %s207, %s209
      %p213 = scmp.eq.s32.totalorder %s26, 0
      %p214 = por %p212, %p213
      %p215 = scmp.ne.s32.totalorder %s207, %s209
      %p216 = scmp.eq.s32.totalorder %s31, 1
      %p217 = por %p215, %p216
      %p218 = scmp.ne.s32.totalorder %s209, %s210
      %p219 = scmp.eq.s32.totalorder %s31, 0
      %p220 = por %p218, %p219
      %p221 = scmp.ne.s32.totalorder %s209, %s210
      %p222 = scmp.eq.s32.totalorder %s32, 1
      %p223 = por %p221, %p222
      %p225 = scmp.ne.s32.totalorder %s210, %s224
      %p226 = scmp.eq.s32.totalorder %s32, 0
      %p227 = por %p225, %p226
      %s229 = sadd.s32 %s228, 1
      %p232 = scmp.eq.s32.totalorder %s26, 1
      %p233 = scmp.ne.s32.totalorder %s228, %s230
      %p234 = scmp.eq.s32.totalorder %s26, 0
      %p235 = por %p233, %p234
      %p236 = scmp.ne.s32.totalorder %s228, %s230
      %p237 = scmp.eq.s32.totalorder %s31, 1
      %p238 = por %p236, %p237
      %p239 = scmp.ne.s32.totalorder %s230, %s231
      %p240 = scmp.eq.s32.totalorder %s31, 0
      %p241 = por %p239, %p240
      %p242 = scmp.ne.s32.totalorder %s230, %s231
      %p243 = scmp.eq.s32.totalorder %s32, 1
      %p244 = por %p242, %p243
      %p246 = scmp.ne.s32.totalorder %s231, %s245
      %p247 = scmp.eq.s32.totalorder %s32, 0
      %p248 = por %p246, %p247
      %s250 = sadd.s32 %s249, 1
      %p253 = scmp.eq.s32.totalorder %s26, 1
      %p254 = scmp.ne.s32.totalorder %s249, %s251
      %p255 = scmp.eq.s32.totalorder %s26, 0
      %p256 = por %p254, %p255
      %p257 = scmp.ne.s32.totalorder %s249, %s251
      %p258 = scmp.eq.s32.totalorder %s31, 1
      %p259 = por %p257, %p258
      %p260 = scmp.ne.s32.totalorder %s251, %s252
      %p261 = scmp.eq.s32.totalorder %s31, 0
      %p262 = por %p260, %p261
      %p263 = scmp.ne.s32.totalorder %s251, %s252
      %p264 = scmp.eq.s32.totalorder %s32, 1
      %p265 = por %p263, %p264
      %p267 = scmp.ne.s32.totalorder %s252, %s266
      %p268 = scmp.eq.s32.totalorder %s32, 0
      %p269 = por %p267, %p268
      %s270 = ssub.s32 %s26, %s33
      %p271 = scmp.eq.s32.totalorder %s270, 0
      %s273 = sadd.s32 %s272, 1
      %s274 = scalar_select %p271, %s272, %s273
      %p277 = pneg %p271
      %p278 = scmp.eq.s32.totalorder %s26, 1
      %p279 = por %p277, %p278
      %p280 = scmp.ne.s32.totalorder %s272, %s275
      %p281 = scmp.eq.s32.totalorder %s26, 0
      %p282 = por %p280, %p281
      %p283 = scmp.ne.s32.totalorder %s272, %s275
      %p284 = scmp.eq.s32.totalorder %s31, 1
      %p285 = por %p283, %p284
      %p286 = scmp.ne.s32.totalorder %s275, %s276
      %p287 = scmp.eq.s32.totalorder %s31, 0
      %p288 = por %p286, %p287
      %p289 = scmp.ne.s32.totalorder %s275, %s276
      %p290 = scmp.eq.s32.totalorder %s32, 1
      %p291 = por %p289, %p290
      %p293 = scmp.ne.s32.totalorder %s276, %s292
      %p294 = scmp.eq.s32.totalorder %s32, 0
      %p295 = por %p293, %p294
      %p296 = scmp.le.s32.totalorder 1, %s26
      %p297 = scmp.lt.s32.totalorder %s26, 3
      %p298 = pnand %p296, %p297
      %p299 = pneg %p298
      // Predicated region
      $region9: #{decoder_forward.1} parent=5 // pred_check
        _
      $region10: #{decoder_forward.1} parent=5 // pred_check_branch
        %301 = sbr.rel (%p298) target = $region12
      $region11: #{decoder_forward.1} parent=5 // pred_region
        %s302 = ssub.s32 %s26, 1
        // Predicated region
        $region13: #{decoder_forward.1} parent=11 // pred_check
          %p303 = pneg %p73
        $region14: #{decoder_forward.1} parent=11 // pred_check_branch
          %305 = sbr.rel (%p303) target = $region16
        $region15: #{decoder_forward.1} parent=11 // pred_region
          %s307 = ssub.s32 512, 512
          %308 = vsyncadd [#allocation3], %s307
          %s309 = sshll.u32 [#allocation2], 4
          %s310 = int_to_ptr.vmem [resolvable:$true] %s309
          %315 = dma.hbm_to_vmem [thread:$0]  %s1, 512, %s310, [#allocation3], 128, 128, 8
        $region16: #{decoder_forward.1} parent=11 // pred_fallthru
          _
        // Predicated region
        $region17: #{decoder_forward.1} parent=11 // pred_check
          %p316 = pneg %p94
        $region18: #{decoder_forward.1} parent=11 // pred_check_branch
          %318 = sbr.rel (%p316) target = $region20
        $region19: #{decoder_forward.1} parent=11 // pred_region
          %s320 = ssub.s32 16, 16
          %321 = vsyncadd [#allocation6], %s320
          %s323 = sshll.u32 [#allocation5], 4
          %s324 = int_to_ptr.vmem [resolvable:$true] %s323
          %326 = dma.hbm_to_vmem [thread:$0]  %s2, 16, %s324, [#allocation6]
        $region20: #{decoder_forward.1} parent=11 // pred_fallthru
          _
        // Predicated region
        $region21: #{decoder_forward.1} parent=11 // pred_check
          %p327 = pneg %p115
        $region22: #{decoder_forward.1} parent=11 // pred_check_branch
          %329 = sbr.rel (%p327) target = $region24
        $region23: #{decoder_forward.1} parent=11 // pred_region
          %s331 = ssub.s32 2048, 2048
          %332 = vsyncadd [#allocation6], %s331
          %s333 = sshll.u32 [#allocation7], 4
          %s334 = int_to_ptr.vmem [resolvable:$true] %s333
          %339 = dma.hbm_to_vmem [thread:$0]  %s3, 2048, %s334, [#allocation6], 128, 128, 8
        $region24: #{decoder_forward.1} parent=11 // pred_fallthru
          _
        // Predicated region
        $region25: #{decoder_forward.1} parent=11 // pred_check
          %p340 = pneg %p136
        $region26: #{decoder_forward.1} parent=11 // pred_check_branch
          %342 = sbr.rel (%p340) target = $region28
        $region27: #{decoder_forward.1} parent=11 // pred_region
          %s344 = ssub.s32 16, 16
          %345 = vsyncadd [#allocation9], %s344
          %s347 = sshll.u32 [#allocation8], 4
          %s348 = int_to_ptr.vmem [resolvable:$true] %s347
          %350 = dma.hbm_to_vmem [thread:$0]  %s4, 16, %s348, [#allocation9]
        $region28: #{decoder_forward.1} parent=11 // pred_fallthru
          _
        // Predicated region
        $region29: #{decoder_forward.1} parent=11 // pred_check
          %p351 = pneg %p157
        $region30: #{decoder_forward.1} parent=11 // pred_check_branch
          %353 = sbr.rel (%p351) target = $region32
        $region31: #{decoder_forward.1} parent=11 // pred_region
          %s355 = ssub.s32 4096, 4096
          %356 = vsyncadd [#allocation9], %s355
          %s357 = sshll.u32 [#allocation10], 4
          %s358 = int_to_ptr.vmem [resolvable:$true] %s357
          %363 = dma.hbm_to_vmem [thread:$0]  %s5, 4096, %s358, [#allocation9], 256, 256, 16
        $region32: #{decoder_forward.1} parent=11 // pred_fallthru
          _
        // Predicated region
        $region33: #{decoder_forward.1} parent=11 // pred_check
          %p364 = pneg %p178
        $region34: #{decoder_forward.1} parent=11 // pred_check_branch
          %366 = sbr.rel (%p364) target = $region36
        $region35: #{decoder_forward.1} parent=11 // pred_region
          %s368 = ssub.s32 32, 32
          %369 = vsyncadd [#allocation12], %s368
          %s371 = sshll.u32 [#allocation11], 4
          %s372 = int_to_ptr.vmem [resolvable:$true] %s371
          %374 = dma.hbm_to_vmem [thread:$0]  %s6, 32, %s372, [#allocation12]
        $region36: #{decoder_forward.1} parent=11 // pred_fallthru
          _
        // Predicated region
        $region37: #{decoder_forward.1} parent=11 // pred_check
          %p375 = pneg %p199
        $region38: #{decoder_forward.1} parent=11 // pred_check_branch
          %377 = sbr.rel (%p375) target = $region40
        $region39: #{decoder_forward.1} parent=11 // pred_region
          %s379 = ssub.s32 16384, 16384
          %380 = vsyncadd [#allocation12], %s379
          %s381 = sshll.u32 [#allocation13], 4
          %s382 = int_to_ptr.vmem [resolvable:$true] %s381
          %387 = dma.hbm_to_vmem [thread:$0]  %s7, 16384, %s382, [#allocation12], 512, 512, 32
        $region40: #{decoder_forward.1} parent=11 // pred_fallthru
          _
        // Predicated region
        $region41: #{decoder_forward.1} parent=11 // pred_check
          %p388 = pneg %p220
        $region42: #{decoder_forward.1} parent=11 // pred_check_branch
          %390 = sbr.rel (%p388) target = $region44
        $region43: #{decoder_forward.1} parent=11 // pred_region
          %s392 = ssub.s32 64, 64
          %393 = vsyncadd [#allocation15], %s392
          %s395 = sshll.u32 [#allocation14], 4
          %s396 = int_to_ptr.vmem [resolvable:$true] %s395
          %398 = dma.hbm_to_vmem [thread:$0]  %s8, 64, %s396, [#allocation15]
        $region44: #{decoder_forward.1} parent=11 // pred_fallthru
          _
        // Predicated region
        $region45: #{decoder_forward.1} parent=11 // pred_check
          %p399 = pneg %p241
        $region46: #{decoder_forward.1} parent=11 // pred_check_branch
          %401 = sbr.rel (%p399) target = $region48
        $region47: #{decoder_forward.1} parent=11 // pred_region
          %s403 = ssub.s32 57344, 57344
          %404 = vsyncadd [#allocation15], %s403
          %s405 = sshll.u32 [#allocation16], 4
          %s406 = int_to_ptr.vmem [resolvable:$true] %s405
          %411 = dma.hbm_to_vmem [thread:$0]  %s9, 57344, %s406, [#allocation15], 896, 896, 56
        $region48: #{decoder_forward.1} parent=11 // pred_fallthru
          _
        // Predicated region
        $region49: #{decoder_forward.1} parent=11 // pred_check
          %p412 = pneg %p262
        $region50: #{decoder_forward.1} parent=11 // pred_check_branch
          %414 = sbr.rel (%p412) target = $region52
        $region51: #{decoder_forward.1} parent=11 // pred_region
          %s416 = ssub.s32 112, 112
          %417 = vsyncadd [#allocation18], %s416
          %s419 = sshll.u32 [#allocation17], 4
          %s420 = int_to_ptr.vmem [resolvable:$true] %s419
          %422 = dma.hbm_to_vmem [thread:$0]  %s10, 112, %s420, [#allocation18]
        $region52: #{decoder_forward.1} parent=11 // pred_fallthru
          _
      $region12: #{decoder_forward.1} parent=5 // pred_fallthru
        _
      %p423 = scmp.lt.s32.totalorder %s26, 2
      // Predicated region
      $region53: #{decoder_forward.1} parent=5 // pred_check
        %p424 = pneg %p423
      $region54: #{decoder_forward.1} parent=5 // pred_check_branch
        %426 = sbr.rel (%p424) target = $region56
      $region55: #{decoder_forward.1} parent=5 // pred_region
        // Predicated region
        $region57: #{decoder_forward.1} parent=55 // pred_check
          %p427 = pneg %p46
        $region58: #{decoder_forward.1} parent=55 // pred_check_branch
          %429 = sbr.rel (%p427) target = $region60
        $region59: #{decoder_forward.1} parent=55 // pred_region
          %s430 = smul.u32 4, %s26
          %p431 = scmp.lt.s32.totalorder %s430, 7
          %s432 = scalar_select %p431, %s430, 7
          %s433 = smul.addr %s432, 8
          %s434 = scalar_lea.vmem %s0, %s433
          %s435 = smul.u32 4, %s26
        $region60: #{decoder_forward.1} parent=55 // pred_fallthru
          _
      $region56: #{decoder_forward.1} parent=5 // pred_fallthru
        _
      %p436 = scmp.le.s32.totalorder 1, %s26
      %p437 = scmp.lt.s32.totalorder %s26, 3
      %p438 = pnand %p436, %p437
      %p439 = pneg %p438
      // Predicated region
      $region61: #{decoder_forward.1} parent=5 // pred_check
        _
      $region62: #{decoder_forward.1} parent=5 // pred_check_branch
        %441 = sbr.rel (%p438) target = $region64
      $region63: #{decoder_forward.1} parent=5 // pred_region
        %s442 = ssub.s32 %s26, 1
        // Predicated region
        $region65: #{decoder_forward.1} parent=63 // pred_check
          %p443 = pneg %p73
        $region66: #{decoder_forward.1} parent=63 // pred_check_branch
          %445 = sbr.rel (%p443) target = $region68
        $region67: #{decoder_forward.1} parent=63 // pred_region
          %446 = dma.done [#allocation3], 512
        $region68: #{decoder_forward.1} parent=63 // pred_fallthru
          _
        // Predicated region
        $region69: #{decoder_forward.1} parent=63 // pred_check
          %p447 = pneg %p94
        $region70: #{decoder_forward.1} parent=63 // pred_check_branch
          %449 = sbr.rel (%p447) target = $region72
        $region71: #{decoder_forward.1} parent=63 // pred_region
          %450 = dma.done [#allocation6], 16
        $region72: #{decoder_forward.1} parent=63 // pred_fallthru
          _
        // Predicated region
        $region73: #{decoder_forward.1} parent=63 // pred_check
          %p451 = pneg %p115
        $region74: #{decoder_forward.1} parent=63 // pred_check_branch
          %453 = sbr.rel (%p451) target = $region76
        $region75: #{decoder_forward.1} parent=63 // pred_region
          %454 = dma.done [#allocation6], 2048
        $region76: #{decoder_forward.1} parent=63 // pred_fallthru
          _
        // Predicated region
        $region77: #{decoder_forward.1} parent=63 // pred_check
          %p455 = pneg %p136
        $region78: #{decoder_forward.1} parent=63 // pred_check_branch
          %457 = sbr.rel (%p455) target = $region80
        $region79: #{decoder_forward.1} parent=63 // pred_region
          %458 = dma.done [#allocation9], 16
        $region80: #{decoder_forward.1} parent=63 // pred_fallthru
          _
        // Predicated region
        $region81: #{decoder_forward.1} parent=63 // pred_check
          %p459 = pneg %p157
        $region82: #{decoder_forward.1} parent=63 // pred_check_branch
          %461 = sbr.rel (%p459) target = $region84
        $region83: #{decoder_forward.1} parent=63 // pred_region
          %462 = dma.done [#allocation9], 4096
        $region84: #{decoder_forward.1} parent=63 // pred_fallthru
          _
        // Predicated region
        $region85: #{decoder_forward.1} parent=63 // pred_check
          %p463 = pneg %p178
        $region86: #{decoder_forward.1} parent=63 // pred_check_branch
          %465 = sbr.rel (%p463) target = $region88
        $region87: #{decoder_forward.1} parent=63 // pred_region
          %466 = dma.done [#allocation12], 32
        $region88: #{decoder_forward.1} parent=63 // pred_fallthru
          _
        // Predicated region
        $region89: #{decoder_forward.1} parent=63 // pred_check
          %p467 = pneg %p199
        $region90: #{decoder_forward.1} parent=63 // pred_check_branch
          %469 = sbr.rel (%p467) target = $region92
        $region91: #{decoder_forward.1} parent=63 // pred_region
          %470 = dma.done [#allocation12], 16384
        $region92: #{decoder_forward.1} parent=63 // pred_fallthru
          _
        // Predicated region
        $region93: #{decoder_forward.1} parent=63 // pred_check
          %p471 = pneg %p220
        $region94: #{decoder_forward.1} parent=63 // pred_check_branch
          %473 = sbr.rel (%p471) target = $region96
        $region95: #{decoder_forward.1} parent=63 // pred_region
          %474 = dma.done [#allocation15], 64
        $region96: #{decoder_forward.1} parent=63 // pred_fallthru
          _
        // Predicated region
        $region97: #{decoder_forward.1} parent=63 // pred_check
          %p475 = pneg %p241
        $region98: #{decoder_forward.1} parent=63 // pred_check_branch
          %477 = sbr.rel (%p475) target = $region100
        $region99: #{decoder_forward.1} parent=63 // pred_region
          %478 = dma.done [#allocation15], 57344
        $region100: #{decoder_forward.1} parent=63 // pred_fallthru
          _
        // Predicated region
        $region101: #{decoder_forward.1} parent=63 // pred_check
          %p479 = pneg %p262
        $region102: #{decoder_forward.1} parent=63 // pred_check_branch
          %481 = sbr.rel (%p479) target = $region104
        $region103: #{decoder_forward.1} parent=63 // pred_region
          %482 = dma.done [#allocation18], 112
        $region104: #{decoder_forward.1} parent=63 // pred_fallthru
          _
        %s483 = smul.u32 4, %s31
        %p484 = scmp.lt.s32.totalorder %s483, 7
        %s485 = scalar_select %p484, %s483, 7
        %s486 = smul.addr %s485, 8
        %s487 = scalar_lea.vmem %s0, %s486
        %p488 = pneg %p52
        %p489 = pneg %p49
        %p490 = pneg %p73
        %p491 = pneg %p70
        %p492 = pneg %p94
        %p493 = pneg %p91
        %p494 = pneg %p115
        %p495 = pneg %p112
        %p496 = pneg %p136
        %p497 = pneg %p133
        %p498 = pneg %p157
        %p499 = pneg %p154
        %p500 = pneg %p178
        %p501 = pneg %p175
        %p502 = pneg %p199
        %p503 = pneg %p196
        %p504 = pneg %p220
        %p505 = pneg %p217
        %p506 = pneg %p241
        %p507 = pneg %p238
        %p508 = pneg %p262
        %p509 = pneg %p259
        %p510 = pneg %p288
        %p511 = pneg %p285
        %s512 = sand.u32 %s275, 1
        %s513 = scalar_lea.sflag [#allocation4], %s512
        %s514 = sand.u32 %s275, 1
        %s515 = smul.addr %s514, 224
        %s516 = scalar_lea.vmem [#allocation19], %s515
        %s517 = smul.u32 4, %s31
        %p518 = scmp.lt.s32.totalorder %s517, 7
        %s519 = scalar_select %p518, %s517, 7
        %s520 = smul.addr %s519, 8
        %s521 = scalar_lea.vmem %s0, %s520
        %s522 = smul.u32 4, %s31
        %s523 = smul.u32 4, %s31
        %v524 = vld [vmem:[%s521] sm:$0xff]
        %v525 = vld [vmem:[%s521 + $0x8] sm:$0xff]
        %v526 = vld [vmem:[%s521 + $0x10] sm:$0xff]
        %v527 = vld [vmem:[%s521 + $0x18] sm:$0xff]
        %v528 = vld [vmem:[#allocation2] sm:$0xff]
        %v529 = vld [vmem:[#allocation2 + $0x8] sm:$0xff]
        %v530 = vld [vmem:[#allocation2 + $0x10] sm:$0xff]
        %v531 = vld [vmem:[#allocation2 + $0x18] sm:$0xff]
        %v532 = vld [vmem:[#allocation5] sm:$0x1]
        %v534 = vlaneseq
        %v535 = vshrl.u32 %v534, 7
        %v536 = vsub.s32 0, %v535
        %v537 = vrot.slane %v532, %v536
        %vm539 = vcmask 261120
        %v541 = vsel %vm539, %v524, 0
        %v544 = vsel %vm539, %v525, 0
        %v547 = vsel %vm539, %v526, 0
        %v550 = vsel %vm539, %v527, 0
        %552 = vmatprep.subr.mxu0 0.0
        %553 = vmatpush1.msra.mxu0 %v528
        %554 = vmatprep.subr.mxu0 0.0
        %555 = vmatpush1.msra.mxu0 %v529
        %556 = vmatprep.subr.mxu0 0.0
        %557 = vmatpush1.msra.mxu0 %v530
        %558 = vmatprep.subr.mxu0 0.0
        %559 = vmatpush1.msra.mxu0 %v531
        %560 = vmatprep.subr.mxu0 0.0
        %561 = vmatpush1.msra.mxu0 0.0
        %562 = vmatprep.subr.mxu0 0.0
        %563 = vmatpush1.msra.mxu0 0.0
        %564 = vmatprep.subr.mxu0 0.0
        %565 = vmatpush1.msra.mxu0 0.0
        %566 = vmatprep.subr.mxu0 0.0
        %567 = vmatpush1.msra.mxu0 0.0
        %568 = vmatprep.subr.mxu0 0.0
        %569 = vmatpush1.msra.mxu0 0.0
        %570 = vmatprep.subr.mxu0 0.0
        %571 = vmatpush1.msra.mxu0 0.0
        %572 = vmatprep.subr.mxu0 0.0
        %573 = vmatpush1.msra.mxu0 0.0
        %574 = vmatprep.subr.mxu0 0.0
        %575 = vmatpush1.msra.mxu0 0.0
        %576 = vmatprep.subr.mxu0 0.0
        %577 = vmatpush1.msra.mxu0 0.0
        %578 = vmatprep.subr.mxu0 0.0
        %579 = vmatpush1.msra.mxu0 0.0
        %580 = vmatprep.subr.mxu0 0.0
        %581 = vmatpush1.msra.mxu0 0.0
        %582 = vmatprep.subr.mxu0 0.0
        %583 = vmatpush1.msra.mxu0 0.0
        %584 = vmatprep.subr.mxu0 0.0
        %585 = vmatpush1.msra.mxu0 0.0
        %586 = vmatprep.subr.mxu0 0.0
        %587 = vmatpush1.msra.mxu0 0.0
        %588 = vmatprep.subr.mxu0 0.0
        %589 = vmatpush1.msra.mxu0 0.0
        %590 = vmatprep.subr.mxu0 0.0
        %591 = vmatpush1.msra.mxu0 0.0
        %592 = vmatprep.subr.mxu0 0.0
        %593 = vmatpush1.msra.mxu0 0.0
        %594 = vmatprep.subr.mxu0 0.0
        %595 = vmatpush1.msra.mxu0 0.0
        %596 = vmatprep.subr.mxu0 0.0
        %597 = vmatpush1.msra.mxu0 0.0
        %598 = vmatprep.subr.mxu0 0.0
        %599 = vmatpush1.msra.mxu0 0.0
        %600 = vmatprep.subr.mxu0 0.0
        %601 = vmatpush1.msra.mxu0 0.0
        %602 = vmatprep.subr.mxu0 0.0
        %603 = vmatpush1.msra.mxu0 0.0
        %604 = vmatprep.subr.mxu0 0.0
        %605 = vmatpush1.msra.mxu0 0.0
        %606 = vmatprep.subr.mxu0 0.0
        %607 = vmatpush1.msra.mxu0 0.0
        %608 = vmatprep.subr.mxu0 0.0
        %609 = vmatpush1.msra.mxu0 0.0
        %610 = vmatprep.subr.mxu0 0.0
        %611 = vmatpush1.msra.mxu0 0.0
        %612 = vmatprep.subr.mxu0 0.0
        %613 = vmatpush1.msra.mxu0 0.0
        %614 = vmatprep.subr.mxu0 0.0
        %615 = vmatpush1.msra.mxu0 0.0
        %616 = vmatprep.mubr.f32.mxu0 0.0
        %617 = vmatmul.mubr.f32.gmra.mrb[0].mxu0 %v541
        %v618 = vpop.f32.mrb[0].mxu0
        %v619 = vadd.f32 %v537, %v618
        %v620 = vpop.f32.mrb[0].mxu0
        %621 = vmatprep.mubr.f32.mxu0 0.0
        %622 = vmatmul.mubr.f32.gmra.mrb[0].mxu0 %v544
        %v623 = vpop.f32.mrb[0].mxu0
        %v624 = vadd.f32 %v537, %v623
        %v625 = vpop.f32.mrb[0].mxu0
        %626 = vmatprep.mubr.f32.mxu0 0.0
        %627 = vmatmul.mubr.f32.gmra.mrb[0].mxu0 %v547
        %v628 = vpop.f32.mrb[0].mxu0
        %v629 = vadd.f32 %v537, %v628
        %v630 = vpop.f32.mrb[0].mxu0
        %631 = vmatprep.mubr.f32.mxu0 0.0
        %632 = vmatmul.mubr.f32.gmra.mrb[0].mxu0 %v550
        %v633 = vpop.f32.mrb[0].mxu0
        %v634 = vadd.f32 %v537, %v633
        %v635 = vpop.f32.mrb[0].mxu0
        %636 = vdwg.mxu0
        %v637 = vmax.f32 %v619, 0.0
        %v638 = vmax.f32 %v624, 0.0
        %v639 = vmax.f32 %v629, 0.0
        %v640 = vmax.f32 %v634, 0.0
        %v641 = vld [vmem:[#allocation7] sm:$0xff]
        %v642 = vld [vmem:[#allocation7 + $0x8] sm:$0xff]
        %v643 = vld [vmem:[#allocation7 + $0x10] sm:$0xff]
        %v644 = vld [vmem:[#allocation7 + $0x18] sm:$0xff]
        %v645 = vld [vmem:[#allocation7 + $0x20] sm:$0xff]
        %v646 = vld [vmem:[#allocation7 + $0x28] sm:$0xff]
        %v647 = vld [vmem:[#allocation7 + $0x30] sm:$0xff]
        %v648 = vld [vmem:[#allocation7 + $0x38] sm:$0xff]
        %v649 = vld [vmem:[#allocation7 + $0x40] sm:$0xff]
        %v650 = vld [vmem:[#allocation7 + $0x48] sm:$0xff]
        %v651 = vld [vmem:[#allocation7 + $0x50] sm:$0xff]
        %v652 = vld [vmem:[#allocation7 + $0x58] sm:$0xff]
        %v653 = vld [vmem:[#allocation7 + $0x60] sm:$0xff]
        %v654 = vld [vmem:[#allocation7 + $0x68] sm:$0xff]
        %v655 = vld [vmem:[#allocation7 + $0x70] sm:$0xff]
        %v656 = vld [vmem:[#allocation7 + $0x78] sm:$0xff]
        %v657 = vld [vmem:[#allocation8] sm:$0x1]
        %v659 = vlaneseq
        %v660 = vshrl.u32 %v659, 7
        %v661 = vsub.s32 0, %v660
        %v662 = vrot.slane %v657, %v661
        %664 = vmatprep.subr.mxu0 0.0
        %665 = vmatpush1.msra.mxu0 %v641
        %666 = vmatprep.subr.mxu0 0.0
        %667 = vmatpush1.msra.mxu0 %v642
        %668 = vmatprep.subr.mxu0 0.0
        %669 = vmatpush1.msra.mxu0 %v643
        %670 = vmatprep.subr.mxu0 0.0
        %671 = vmatpush1.msra.mxu0 %v644
        %672 = vmatprep.subr.mxu0 0.0
        %673 = vmatpush1.msra.mxu0 %v645
        %674 = vmatprep.subr.mxu0 0.0
        %675 = vmatpush1.msra.mxu0 %v646
        %676 = vmatprep.subr.mxu0 0.0
        %677 = vmatpush1.msra.mxu0 %v647
        %678 = vmatprep.subr.mxu0 0.0
        %679 = vmatpush1.msra.mxu0 %v648
        %680 = vmatprep.subr.mxu0 0.0
        %681 = vmatpush1.msra.mxu0 %v649
        %682 = vmatprep.subr.mxu0 0.0
        %683 = vmatpush1.msra.mxu0 %v650
        %684 = vmatprep.subr.mxu0 0.0
        %685 = vmatpush1.msra.mxu0 %v651
        %686 = vmatprep.subr.mxu0 0.0
        %687 = vmatpush1.msra.mxu0 %v652
        %688 = vmatprep.subr.mxu0 0.0
        %689 = vmatpush1.msra.mxu0 %v653
        %690 = vmatprep.subr.mxu0 0.0
        %691 = vmatpush1.msra.mxu0 %v654
        %692 = vmatprep.subr.mxu0 0.0
        %693 = vmatpush1.msra.mxu0 %v655
        %694 = vmatprep.subr.mxu0 0.0
        %695 = vmatpush1.msra.mxu0 %v656
        %696 = vmatprep.subr.mxu0 0.0
        %697 = vmatpush1.msra.mxu0 0.0
        %698 = vmatprep.subr.mxu0 0.0
        %699 = vmatpush1.msra.mxu0 0.0
        %700 = vmatprep.subr.mxu0 0.0
        %701 = vmatpush1.msra.mxu0 0.0
        %702 = vmatprep.subr.mxu0 0.0
        %703 = vmatpush1.msra.mxu0 0.0
        %704 = vmatprep.subr.mxu0 0.0
        %705 = vmatpush1.msra.mxu0 0.0
        %706 = vmatprep.subr.mxu0 0.0
        %707 = vmatpush1.msra.mxu0 0.0
        %708 = vmatprep.subr.mxu0 0.0
        %709 = vmatpush1.msra.mxu0 0.0
        %710 = vmatprep.subr.mxu0 0.0
        %711 = vmatpush1.msra.mxu0 0.0
        %712 = vmatprep.subr.mxu0 0.0
        %713 = vmatpush1.msra.mxu0 0.0
        %714 = vmatprep.subr.mxu0 0.0
        %715 = vmatpush1.msra.mxu0 0.0
        %716 = vmatprep.subr.mxu0 0.0
        %717 = vmatpush1.msra.mxu0 0.0
        %718 = vmatprep.subr.mxu0 0.0
        %719 = vmatpush1.msra.mxu0 0.0
        %720 = vmatprep.subr.mxu0 0.0
        %721 = vmatpush1.msra.mxu0 0.0
        %722 = vmatprep.subr.mxu0 0.0
        %723 = vmatpush1.msra.mxu0 0.0
        %724 = vmatprep.subr.mxu0 0.0
        %725 = vmatpush1.msra.mxu0 0.0
        %726 = vmatprep.subr.mxu0 0.0
        %727 = vmatpush1.msra.mxu0 0.0
        %728 = vmatprep.mubr.f32.mxu0 0.0
        %729 = vmatmul.mubr.f32.gmra.mrb[0].mxu0 %v637
        %v730 = vpop.f32.mrb[0].mxu0
        %v731 = vadd.f32 %v662, %v730
        %v732 = vpop.f32.mrb[0].mxu0
        %733 = vmatprep.mubr.f32.mxu0 0.0
        %734 = vmatmul.mubr.f32.gmra.mrb[0].mxu0 %v638
        %v735 = vpop.f32.mrb[0].mxu0
        %v736 = vadd.f32 %v662, %v735
        %v737 = vpop.f32.mrb[0].mxu0
        %738 = vmatprep.mubr.f32.mxu0 0.0
        %739 = vmatmul.mubr.f32.gmra.mrb[0].mxu0 %v639
        %v740 = vpop.f32.mrb[0].mxu0
        %v741 = vadd.f32 %v662, %v740
        %v742 = vpop.f32.mrb[0].mxu0
        %743 = vmatprep.mubr.f32.mxu0 0.0
        %744 = vmatmul.mubr.f32.gmra.mrb[0].mxu0 %v640
        %v745 = vpop.f32.mrb[0].mxu0
        %v746 = vadd.f32 %v662, %v745
        %v747 = vpop.f32.mrb[0].mxu0
        %748 = vdwg.mxu0
        %v749 = vmax.f32 %v731, 0.0
        %v750 = vmax.f32 %v736, 0.0
        %v751 = vmax.f32 %v741, 0.0
        %v752 = vmax.f32 %v746, 0.0
        %v753 = vld [vmem:[#allocation10] sm:$0xff]
        %v754 = vld [vmem:[#allocation10 + $0x8] sm:$0xff]
        %v755 = vld [vmem:[#allocation10 + $0x10] sm:$0xff]
        %v756 = vld [vmem:[#allocation10 + $0x18] sm:$0xff]
        %v757 = vld [vmem:[#allocation10 + $0x20] sm:$0xff]
        %v758 = vld [vmem:[#allocation10 + $0x28] sm:$0xff]
        %v759 = vld [vmem:[#allocation10 + $0x30] sm:$0xff]
        %v760 = vld [vmem:[#allocation10 + $0x38] sm:$0xff]
        %v761 = vld [vmem:[#allocation10 + $0x40] sm:$0xff]
        %v762 = vld [vmem:[#allocation10 + $0x48] sm:$0xff]
        %v763 = vld [vmem:[#allocation10 + $0x50] sm:$0xff]
        %v764 = vld [vmem:[#allocation10 + $0x58] sm:$0xff]
        %v765 = vld [vmem:[#allocation10 + $0x60] sm:$0xff]
        %v766 = vld [vmem:[#allocation10 + $0x68] sm:$0xff]
        %v767 = vld [vmem:[#allocation10 + $0x70] sm:$0xff]
        %v768 = vld [vmem:[#allocation10 + $0x78] sm:$0xff]
        %v769 = vld [vmem:[#allocation10 + $0x80] sm:$0xff]
        %v770 = vld [vmem:[#allocation10 + $0x88] sm:$0xff]
        %v771 = vld [vmem:[#allocation10 + $0x90] sm:$0xff]
        %v772 = vld [vmem:[#allocation10 + $0x98] sm:$0xff]
        %v773 = vld [vmem:[#allocation10 + $0xa0] sm:$0xff]
        %v774 = vld [vmem:[#allocation10 + $0xa8] sm:$0xff]
        %v775 = vld [vmem:[#allocation10 + $0xb0] sm:$0xff]
        %v776 = vld [vmem:[#allocation10 + $0xb8] sm:$0xff]
        %v777 = vld [vmem:[#allocation10 + $0xc0] sm:$0xff]
        %v778 = vld [vmem:[#allocation10 + $0xc8] sm:$0xff]
        %v779 = vld [vmem:[#allocation10 + $0xd0] sm:$0xff]
        %v780 = vld [vmem:[#allocation10 + $0xd8] sm:$0xff]
        %v781 = vld [vmem:[#allocation10 + $0xe0] sm:$0xff]
        %v782 = vld [vmem:[#allocation10 + $0xe8] sm:$0xff]
        %v783 = vld [vmem:[#allocation10 + $0xf0] sm:$0xff]
        %v784 = vld [vmem:[#allocation10 + $0xf8] sm:$0xff]
        %v785 = vld [vmem:[#allocation11] sm:$0x3]
        %v787 = vlaneseq
        %v788 = vshrl.u32 %v787, 7
        %v789 = vsub.s32 0, %v788
        %v790 = vrot.slane %v785, %v789
        %v791 = vlaneseq
        %v792 = vshrl.u32 %v791, 7
        %v793 = vsub.s32 1, %v792
        %v794 = vrot.slane %v785, %v793
        %797 = vmatprep.subr.mxu0 %v754
        %798 = vmatpush1.msra.mxu0 %v753
        %799 = vmatprep.subr.mxu0 %v756
        %800 = vmatpush1.msra.mxu0 %v755
        %801 = vmatprep.subr.mxu0 %v758
        %802 = vmatpush1.msra.mxu0 %v757
        %803 = vmatprep.subr.mxu0 %v760
        %804 = vmatpush1.msra.mxu0 %v759
        %805 = vmatprep.subr.mxu0 %v762
        %806 = vmatpush1.msra.mxu0 %v761
        %807 = vmatprep.subr.mxu0 %v764
        %808 = vmatpush1.msra.mxu0 %v763
        %809 = vmatprep.subr.mxu0 %v766
        %810 = vmatpush1.msra.mxu0 %v765
        %811 = vmatprep.subr.mxu0 %v768
        %812 = vmatpush1.msra.mxu0 %v767
        %813 = vmatprep.subr.mxu0 %v770
        %814 = vmatpush1.msra.mxu0 %v769
        %815 = vmatprep.subr.mxu0 %v772
        %816 = vmatpush1.msra.mxu0 %v771
        %817 = vmatprep.subr.mxu0 %v774
        %818 = vmatpush1.msra.mxu0 %v773
        %819 = vmatprep.subr.mxu0 %v776
        %820 = vmatpush1.msra.mxu0 %v775
        %821 = vmatprep.subr.mxu0 %v778
        %822 = vmatpush1.msra.mxu0 %v777
        %823 = vmatprep.subr.mxu0 %v780
        %824 = vmatpush1.msra.mxu0 %v779
        %825 = vmatprep.subr.mxu0 %v782
        %826 = vmatpush1.msra.mxu0 %v781
        %827 = vmatprep.subr.mxu0 %v784
        %828 = vmatpush1.msra.mxu0 %v783
        %829 = vmatprep.subr.mxu0 0.0
        %830 = vmatpush1.msra.mxu0 0.0
        %831 = vmatprep.subr.mxu0 0.0
        %832 = vmatpush1.msra.mxu0 0.0
        %833 = vmatprep.subr.mxu0 0.0
        %834 = vmatpush1.msra.mxu0 0.0
        %835 = vmatprep.subr.mxu0 0.0
        %836 = vmatpush1.msra.mxu0 0.0
        %837 = vmatprep.subr.mxu0 0.0
        %838 = vmatpush1.msra.mxu0 0.0
        %839 = vmatprep.subr.mxu0 0.0
        %840 = vmatpush1.msra.mxu0 0.0
        %841 = vmatprep.subr.mxu0 0.0
        %842 = vmatpush1.msra.mxu0 0.0
        %843 = vmatprep.subr.mxu0 0.0
        %844 = vmatpush1.msra.mxu0 0.0
        %845 = vmatprep.subr.mxu0 0.0
        %846 = vmatpush1.msra.mxu0 0.0
        %847 = vmatprep.subr.mxu0 0.0
        %848 = vmatpush1.msra.mxu0 0.0
        %849 = vmatprep.subr.mxu0 0.0
        %850 = vmatpush1.msra.mxu0 0.0
        %851 = vmatprep.subr.mxu0 0.0
        %852 = vmatpush1.msra.mxu0 0.0
        %853 = vmatprep.subr.mxu0 0.0
        %854 = vmatpush1.msra.mxu0 0.0
        %855 = vmatprep.subr.mxu0 0.0
        %856 = vmatpush1.msra.mxu0 0.0
        %857 = vmatprep.subr.mxu0 0.0
        %858 = vmatpush1.msra.mxu0 0.0
        %859 = vmatprep.subr.mxu0 0.0
        %860 = vmatpush1.msra.mxu0 0.0
        %861 = vmatprep.mubr.f32.mxu0 0.0
        %862 = vmatmul.mubr.f32.gmra.mrb[0].mxu0 %v749
        %v863 = vpop.f32.mrb[0].mxu0
        %v864 = vadd.f32 %v790, %v863
        %v865 = vpop.f32.mrb[0].mxu0
        %v866 = vadd.f32 %v794, %v865
        %867 = vmatprep.mubr.f32.mxu0 0.0
        %868 = vmatmul.mubr.f32.gmra.mrb[0].mxu0 %v750
        %v869 = vpop.f32.mrb[0].mxu0
        %v870 = vadd.f32 %v790, %v869
        %v871 = vpop.f32.mrb[0].mxu0
        %v872 = vadd.f32 %v794, %v871
        %873 = vmatprep.mubr.f32.mxu0 0.0
        %874 = vmatmul.mubr.f32.gmra.mrb[0].mxu0 %v751
        %v875 = vpop.f32.mrb[0].mxu0
        %v876 = vadd.f32 %v790, %v875
        %v877 = vpop.f32.mrb[0].mxu0
        %v878 = vadd.f32 %v794, %v877
        %879 = vmatprep.mubr.f32.mxu0 0.0
        %880 = vmatmul.mubr.f32.gmra.mrb[0].mxu0 %v752
        %v881 = vpop.f32.mrb[0].mxu0
        %v882 = vadd.f32 %v790, %v881
        %v883 = vpop.f32.mrb[0].mxu0
        %v884 = vadd.f32 %v794, %v883
        %885 = vdwg.mxu0
        %v886 = vmax.f32 %v864, 0.0
        %v887 = vmax.f32 %v866, 0.0
        %v888 = vmax.f32 %v870, 0.0
        %v889 = vmax.f32 %v872, 0.0
        %v890 = vmax.f32 %v876, 0.0
        %v891 = vmax.f32 %v878, 0.0
        %v892 = vmax.f32 %v882, 0.0
        %v893 = vmax.f32 %v884, 0.0
        %v894 = vld [vmem:[#allocation13] sm:$0xff]
        %v895 = vld [vmem:[#allocation13 + $0x8] sm:$0xff]
        %v896 = vld [vmem:[#allocation13 + $0x10] sm:$0xff]
        %v897 = vld [vmem:[#allocation13 + $0x18] sm:$0xff]
        %v898 = vld [vmem:[#allocation13 + $0x20] sm:$0xff]
        %v899 = vld [vmem:[#allocation13 + $0x28] sm:$0xff]
        %v900 = vld [vmem:[#allocation13 + $0x30] sm:$0xff]
        %v901 = vld [vmem:[#allocation13 + $0x38] sm:$0xff]
        %v902 = vld [vmem:[#allocation13 + $0x40] sm:$0xff]
        %v903 = vld [vmem:[#allocation13 + $0x48] sm:$0xff]
        %v904 = vld [vmem:[#allocation13 + $0x50] sm:$0xff]
        %v905 = vld [vmem:[#allocation13 + $0x58] sm:$0xff]
        %v906 = vld [vmem:[#allocation13 + $0x60] sm:$0xff]
        %v907 = vld [vmem:[#allocation13 + $0x68] sm:$0xff]
        %v908 = vld [vmem:[#allocation13 + $0x70] sm:$0xff]
        %v909 = vld [vmem:[#allocation13 + $0x78] sm:$0xff]
        %v910 = vld [vmem:[#allocation13 + $0x80] sm:$0xff]
        %v911 = vld [vmem:[#allocation13 + $0x88] sm:$0xff]
        %v912 = vld [vmem:[#allocation13 + $0x90] sm:$0xff]
        %v913 = vld [vmem:[#allocation13 + $0x98] sm:$0xff]
        %v914 = vld [vmem:[#allocation13 + $0xa0] sm:$0xff]
        %v915 = vld [vmem:[#allocation13 + $0xa8] sm:$0xff]
        %v916 = vld [vmem:[#allocation13 + $0xb0] sm:$0xff]
        %v917 = vld [vmem:[#allocation13 + $0xb8] sm:$0xff]
        %v918 = vld [vmem:[#allocation13 + $0xc0] sm:$0xff]
        %v919 = vld [vmem:[#allocation13 + $0xc8] sm:$0xff]
        %v920 = vld [vmem:[#allocation13 + $0xd0] sm:$0xff]
        %v921 = vld [vmem:[#allocation13 + $0xd8] sm:$0xff]
        %v922 = vld [vmem:[#allocation13 + $0xe0] sm:$0xff]
        %v923 = vld [vmem:[#allocation13 + $0xe8] sm:$0xff]
        %v924 = vld [vmem:[#allocation13 + $0xf0] sm:$0xff]
        %v925 = vld [vmem:[#allocation13 + $0xf8] sm:$0xff]
        %v926 = vld [vmem:[#allocation13 + $0x100] sm:$0xff]
        %v927 = vld [vmem:[#allocation13 + $0x108] sm:$0xff]
        %v928 = vld [vmem:[#allocation13 + $0x110] sm:$0xff]
        %v929 = vld [vmem:[#allocation13 + $0x118] sm:$0xff]
        %v930 = vld [vmem:[#allocation13 + $0x120] sm:$0xff]
        %v931 = vld [vmem:[#allocation13 + $0x128] sm:$0xff]
        %v932 = vld [vmem:[#allocation13 + $0x130] sm:$0xff]
        %v933 = vld [vmem:[#allocation13 + $0x138] sm:$0xff]
        %v934 = vld [vmem:[#allocation13 + $0x140] sm:$0xff]
        %v935 = vld [vmem:[#allocation13 + $0x148] sm:$0xff]
        %v936 = vld [vmem:[#allocation13 + $0x150] sm:$0xff]
        %v937 = vld [vmem:[#allocation13 + $0x158] sm:$0xff]
        %v938 = vld [vmem:[#allocation13 + $0x160] sm:$0xff]
        %v939 = vld [vmem:[#allocation13 + $0x168] sm:$0xff]
        %v940 = vld [vmem:[#allocation13 + $0x170] sm:$0xff]
        %v941 = vld [vmem:[#allocation13 + $0x178] sm:$0xff]
        %v942 = vld [vmem:[#allocation13 + $0x180] sm:$0xff]
        %v943 = vld [vmem:[#allocation13 + $0x188] sm:$0xff]
        %v944 = vld [vmem:[#allocation13 + $0x190] sm:$0xff]
        %v945 = vld [vmem:[#allocation13 + $0x198] sm:$0xff]
        %v946 = vld [vmem:[#allocation13 + $0x1a0] sm:$0xff]
        %v947 = vld [vmem:[#allocation13 + $0x1a8] sm:$0xff]
        %v948 = vld [vmem:[#allocation13 + $0x1b0] sm:$0xff]
        %v949 = vld [vmem:[#allocation13 + $0x1b8] sm:$0xff]
        %v950 = vld [vmem:[#allocation13 + $0x1c0] sm:$0xff]
        %v951 = vld [vmem:[#allocation13 + $0x1c8] sm:$0xff]
        %v952 = vld [vmem:[#allocation13 + $0x1d0] sm:$0xff]
        %v953 = vld [vmem:[#allocation13 + $0x1d8] sm:$0xff]
        %v954 = vld [vmem:[#allocation13 + $0x1e0] sm:$0xff]
        %v955 = vld [vmem:[#allocation13 + $0x1e8] sm:$0xff]
        %v956 = vld [vmem:[#allocation13 + $0x1f0] sm:$0xff]
        %v957 = vld [vmem:[#allocation13 + $0x1f8] sm:$0xff]
        %v958 = vld [vmem:[#allocation13 + $0x200] sm:$0xff]
        %v959 = vld [vmem:[#allocation13 + $0x208] sm:$0xff]
        %v960 = vld [vmem:[#allocation13 + $0x210] sm:$0xff]
        %v961 = vld [vmem:[#allocation13 + $0x218] sm:$0xff]
        %v962 = vld [vmem:[#allocation13 + $0x220] sm:$0xff]
        %v963 = vld [vmem:[#allocation13 + $0x228] sm:$0xff]
        %v964 = vld [vmem:[#allocation13 + $0x230] sm:$0xff]
        %v965 = vld [vmem:[#allocation13 + $0x238] sm:$0xff]
        %v966 = vld [vmem:[#allocation13 + $0x240] sm:$0xff]
        %v967 = vld [vmem:[#allocation13 + $0x248] sm:$0xff]
        %v968 = vld [vmem:[#allocation13 + $0x250] sm:$0xff]
        %v969 = vld [vmem:[#allocation13 + $0x258] sm:$0xff]
        %v970 = vld [vmem:[#allocation13 + $0x260] sm:$0xff]
        %v971 = vld [vmem:[#allocation13 + $0x268] sm:$0xff]
        %v972 = vld [vmem:[#allocation13 + $0x270] sm:$0xff]
        %v973 = vld [vmem:[#allocation13 + $0x278] sm:$0xff]
        %v974 = vld [vmem:[#allocation13 + $0x280] sm:$0xff]
        %v975 = vld [vmem:[#allocation13 + $0x288] sm:$0xff]
        %v976 = vld [vmem:[#allocation13 + $0x290] sm:$0xff]
        %v977 = vld [vmem:[#allocation13 + $0x298] sm:$0xff]
        %v978 = vld [vmem:[#allocation13 + $0x2a0] sm:$0xff]
        %v979 = vld [vmem:[#allocation13 + $0x2a8] sm:$0xff]
        %v980 = vld [vmem:[#allocation13 + $0x2b0] sm:$0xff]
        %v981 = vld [vmem:[#allocation13 + $0x2b8] sm:$0xff]
        %v982 = vld [vmem:[#allocation13 + $0x2c0] sm:$0xff]
        %v983 = vld [vmem:[#allocation13 + $0x2c8] sm:$0xff]
        %v984 = vld [vmem:[#allocation13 + $0x2d0] sm:$0xff]
        %v985 = vld [vmem:[#allocation13 + $0x2d8] sm:$0xff]
        %v986 = vld [vmem:[#allocation13 + $0x2e0] sm:$0xff]
        %v987 = vld [vmem:[#allocation13 + $0x2e8] sm:$0xff]
        %v988 = vld [vmem:[#allocation13 + $0x2f0] sm:$0xff]
        %v989 = vld [vmem:[#allocation13 + $0x2f8] sm:$0xff]
        %v990 = vld [vmem:[#allocation13 + $0x300] sm:$0xff]
        %v991 = vld [vmem:[#allocation13 + $0x308] sm:$0xff]
        %v992 = vld [vmem:[#allocation13 + $0x310] sm:$0xff]
        %v993 = vld [vmem:[#allocation13 + $0x318] sm:$0xff]
        %v994 = vld [vmem:[#allocation13 + $0x320] sm:$0xff]
        %v995 = vld [vmem:[#allocation13 + $0x328] sm:$0xff]
        %v996 = vld [vmem:[#allocation13 + $0x330] sm:$0xff]
        %v997 = vld [vmem:[#allocation13 + $0x338] sm:$0xff]
        %v998 = vld [vmem:[#allocation13 + $0x340] sm:$0xff]
        %v999 = vld [vmem:[#allocation13 + $0x348] sm:$0xff]
        %v1000 = vld [vmem:[#allocation13 + $0x350] sm:$0xff]
        %v1001 = vld [vmem:[#allocation13 + $0x358] sm:$0xff]
        %v1002 = vld [vmem:[#allocation13 + $0x360] sm:$0xff]
        %v1003 = vld [vmem:[#allocation13 + $0x368] sm:$0xff]
        %v1004 = vld [vmem:[#allocation13 + $0x370] sm:$0xff]
        %v1005 = vld [vmem:[#allocation13 + $0x378] sm:$0xff]
        %v1006 = vld [vmem:[#allocation13 + $0x380] sm:$0xff]
        %v1007 = vld [vmem:[#allocation13 + $0x388] sm:$0xff]
        %v1008 = vld [vmem:[#allocation13 + $0x390] sm:$0xff]
        %v1009 = vld [vmem:[#allocation13 + $0x398] sm:$0xff]
        %v1010 = vld [vmem:[#allocation13 + $0x3a0] sm:$0xff]
        %v1011 = vld [vmem:[#allocation13 + $0x3a8] sm:$0xff]
        %v1012 = vld [vmem:[#allocation13 + $0x3b0] sm:$0xff]
        %v1013 = vld [vmem:[#allocation13 + $0x3b8] sm:$0xff]
        %v1014 = vld [vmem:[#allocation13 + $0x3c0] sm:$0xff]
        %v1015 = vld [vmem:[#allocation13 + $0x3c8] sm:$0xff]
        %v1016 = vld [vmem:[#allocation13 + $0x3d0] sm:$0xff]
        %v1017 = vld [vmem:[#allocation13 + $0x3d8] sm:$0xff]
        %v1018 = vld [vmem:[#allocation13 + $0x3e0] sm:$0xff]
        %v1019 = vld [vmem:[#allocation13 + $0x3e8] sm:$0xff]
        %v1020 = vld [vmem:[#allocation13 + $0x3f0] sm:$0xff]
        %v1021 = vld [vmem:[#allocation13 + $0x3f8] sm:$0xff]
        %v1022 = vld [vmem:[#allocation14] sm:$0xf]
        %v1024 = vlaneseq
        %v1025 = vshrl.u32 %v1024, 7
        %v1026 = vsub.s32 0, %v1025
        %v1027 = vrot.slane %v1022, %v1026
        %v1028 = vlaneseq
        %v1029 = vshrl.u32 %v1028, 7
        %v1030 = vsub.s32 1, %v1029
        %v1031 = vrot.slane %v1022, %v1030
        %v1032 = vlaneseq
        %v1033 = vshrl.u32 %v1032, 7
        %v1034 = vsub.s32 2, %v1033
        %v1035 = vrot.slane %v1022, %v1034
        %v1036 = vlaneseq
        %v1037 = vshrl.u32 %v1036, 7
        %v1038 = vsub.s32 3, %v1037
        %v1039 = vrot.slane %v1022, %v1038
        %1044 = vmatprep.subr.mxu0 %v895
        %1045 = vmatpush1.msra.mxu0 %v894
        %1046 = vmatprep.subr.mxu0 %v899
        %1047 = vmatpush1.msra.mxu0 %v898
        %1048 = vmatprep.subr.mxu0 %v903
        %1049 = vmatpush1.msra.mxu0 %v902
        %1050 = vmatprep.subr.mxu0 %v907
        %1051 = vmatpush1.msra.mxu0 %v906
        %1052 = vmatprep.subr.mxu0 %v911
        %1053 = vmatpush1.msra.mxu0 %v910
        %1054 = vmatprep.subr.mxu0 %v915
        %1055 = vmatpush1.msra.mxu0 %v914
        %1056 = vmatprep.subr.mxu0 %v919
        %1057 = vmatpush1.msra.mxu0 %v918
        %1058 = vmatprep.subr.mxu0 %v923
        %1059 = vmatpush1.msra.mxu0 %v922
        %1060 = vmatprep.subr.mxu0 %v927
        %1061 = vmatpush1.msra.mxu0 %v926
        %1062 = vmatprep.subr.mxu0 %v931
        %1063 = vmatpush1.msra.mxu0 %v930
        %1064 = vmatprep.subr.mxu0 %v935
        %1065 = vmatpush1.msra.mxu0 %v934
        %1066 = vmatprep.subr.mxu0 %v939
        %1067 = vmatpush1.msra.mxu0 %v938
        %1068 = vmatprep.subr.mxu0 %v943
        %1069 = vmatpush1.msra.mxu0 %v942
        %1070 = vmatprep.subr.mxu0 %v947
        %1071 = vmatpush1.msra.mxu0 %v946
        %1072 = vmatprep.subr.mxu0 %v951
        %1073 = vmatpush1.msra.mxu0 %v950
        %1074 = vmatprep.subr.mxu0 %v955
        %1075 = vmatpush1.msra.mxu0 %v954
        %1076 = vmatprep.subr.mxu0 %v959
        %1077 = vmatpush1.msra.mxu0 %v958
        %1078 = vmatprep.subr.mxu0 %v963
        %1079 = vmatpush1.msra.mxu0 %v962
        %1080 = vmatprep.subr.mxu0 %v967
        %1081 = vmatpush1.msra.mxu0 %v966
        %1082 = vmatprep.subr.mxu0 %v971
        %1083 = vmatpush1.msra.mxu0 %v970
        %1084 = vmatprep.subr.mxu0 %v975
        %1085 = vmatpush1.msra.mxu0 %v974
        %1086 = vmatprep.subr.mxu0 %v979
        %1087 = vmatpush1.msra.mxu0 %v978
        %1088 = vmatprep.subr.mxu0 %v983
        %1089 = vmatpush1.msra.mxu0 %v982
        %1090 = vmatprep.subr.mxu0 %v987
        %1091 = vmatpush1.msra.mxu0 %v986
        %1092 = vmatprep.subr.mxu0 %v991
        %1093 = vmatpush1.msra.mxu0 %v990
        %1094 = vmatprep.subr.mxu0 %v995
        %1095 = vmatpush1.msra.mxu0 %v994
        %1096 = vmatprep.subr.mxu0 %v999
        %1097 = vmatpush1.msra.mxu0 %v998
        %1098 = vmatprep.subr.mxu0 %v1003
        %1099 = vmatpush1.msra.mxu0 %v1002
        %1100 = vmatprep.subr.mxu0 %v1007
        %1101 = vmatpush1.msra.mxu0 %v1006
        %1102 = vmatprep.subr.mxu0 %v1011
        %1103 = vmatpush1.msra.mxu0 %v1010
        %1104 = vmatprep.subr.mxu0 %v1015
        %1105 = vmatpush1.msra.mxu0 %v1014
        %1106 = vmatprep.subr.mxu0 %v1019
        %1107 = vmatpush1.msra.mxu0 %v1018
        %1108 = vmatprep.mubr.f32.mxu0 %v887
        %1109 = vmatmul.mubr.f32.gmra.mrb[0].mxu0 %v886
        %v1110 = vpop.f32.mrb[0].mxu0
        %v1111 = vadd.f32 %v1027, %v1110
        %v1112 = vpop.f32.mrb[0].mxu0
        %v1113 = vadd.f32 %v1031, %v1112
        %1114 = vmatprep.mubr.f32.mxu0 %v889
        %1115 = vmatmul.mubr.f32.gmra.mrb[0].mxu0 %v888
        %v1116 = vpop.f32.mrb[0].mxu0
        %v1117 = vadd.f32 %v1027, %v1116
        %v1118 = vpop.f32.mrb[0].mxu0
        %v1119 = vadd.f32 %v1031, %v1118
        %1120 = vmatprep.mubr.f32.mxu0 %v891
        %1121 = vmatmul.mubr.f32.gmra.mrb[0].mxu0 %v890
        %v1122 = vpop.f32.mrb[0].mxu0
        %v1123 = vadd.f32 %v1027, %v1122
        %v1124 = vpop.f32.mrb[0].mxu0
        %v1125 = vadd.f32 %v1031, %v1124
        %1126 = vmatprep.mubr.f32.mxu0 %v893
        %1127 = vmatmul.mubr.f32.gmra.mrb[0].mxu0 %v892
        %v1128 = vpop.f32.mrb[0].mxu0
        %v1129 = vadd.f32 %v1027, %v1128
        %v1130 = vpop.f32.mrb[0].mxu0
        %v1131 = vadd.f32 %v1031, %v1130
        %1132 = vdwg.mxu0
        %1133 = vmatprep.subr.mxu0 %v897
        %1134 = vmatpush1.msra.mxu0 %v896
        %1135 = vmatprep.subr.mxu0 %v901
        %1136 = vmatpush1.msra.mxu0 %v900
        %1137 = vmatprep.subr.mxu0 %v905
        %1138 = vmatpush1.msra.mxu0 %v904
        %1139 = vmatprep.subr.mxu0 %v909
        %1140 = vmatpush1.msra.mxu0 %v908
        %1141 = vmatprep.subr.mxu0 %v913
        %1142 = vmatpush1.msra.mxu0 %v912
        %1143 = vmatprep.subr.mxu0 %v917
        %1144 = vmatpush1.msra.mxu0 %v916
        %1145 = vmatprep.subr.mxu0 %v921
        %1146 = vmatpush1.msra.mxu0 %v920
        %1147 = vmatprep.subr.mxu0 %v925
        %1148 = vmatpush1.msra.mxu0 %v924
        %1149 = vmatprep.subr.mxu0 %v929
        %1150 = vmatpush1.msra.mxu0 %v928
        %1151 = vmatprep.subr.mxu0 %v933
        %1152 = vmatpush1.msra.mxu0 %v932
        %1153 = vmatprep.subr.mxu0 %v937
        %1154 = vmatpush1.msra.mxu0 %v936
        %1155 = vmatprep.subr.mxu0 %v941
        %1156 = vmatpush1.msra.mxu0 %v940
        %1157 = vmatprep.subr.mxu0 %v945
        %1158 = vmatpush1.msra.mxu0 %v944
        %1159 = vmatprep.subr.mxu0 %v949
        %1160 = vmatpush1.msra.mxu0 %v948
        %1161 = vmatprep.subr.mxu0 %v953
        %1162 = vmatpush1.msra.mxu0 %v952
        %1163 = vmatprep.subr.mxu0 %v957
        %1164 = vmatpush1.msra.mxu0 %v956
        %1165 = vmatprep.subr.mxu0 %v961
        %1166 = vmatpush1.msra.mxu0 %v960
        %1167 = vmatprep.subr.mxu0 %v965
        %1168 = vmatpush1.msra.mxu0 %v964
        %1169 = vmatprep.subr.mxu0 %v969
        %1170 = vmatpush1.msra.mxu0 %v968
        %1171 = vmatprep.subr.mxu0 %v973
        %1172 = vmatpush1.msra.mxu0 %v972
        %1173 = vmatprep.subr.mxu0 %v977
        %1174 = vmatpush1.msra.mxu0 %v976
        %1175 = vmatprep.subr.mxu0 %v981
        %1176 = vmatpush1.msra.mxu0 %v980
        %1177 = vmatprep.subr.mxu0 %v985
        %1178 = vmatpush1.msra.mxu0 %v984
        %1179 = vmatprep.subr.mxu0 %v989
        %1180 = vmatpush1.msra.mxu0 %v988
        %1181 = vmatprep.subr.mxu0 %v993
        %1182 = vmatpush1.msra.mxu0 %v992
        %1183 = vmatprep.subr.mxu0 %v997
        %1184 = vmatpush1.msra.mxu0 %v996
        %1185 = vmatprep.subr.mxu0 %v1001
        %1186 = vmatpush1.msra.mxu0 %v1000
        %1187 = vmatprep.subr.mxu0 %v1005
        %1188 = vmatpush1.msra.mxu0 %v1004
        %1189 = vmatprep.subr.mxu0 %v1009
        %1190 = vmatpush1.msra.mxu0 %v1008
        %1191 = vmatprep.subr.mxu0 %v1013
        %1192 = vmatpush1.msra.mxu0 %v1012
        %1193 = vmatprep.subr.mxu0 %v1017
        %1194 = vmatpush1.msra.mxu0 %v1016
        %1195 = vmatprep.subr.mxu0 %v1021
        %1196 = vmatpush1.msra.mxu0 %v1020
        %1197 = vmatprep.mubr.f32.mxu0 %v887
        %1198 = vmatmul.mubr.f32.gmra.mrb[0].mxu0 %v886
        %v1199 = vpop.f32.mrb[0].mxu0
        %v1200 = vadd.f32 %v1035, %v1199
        %v1201 = vpop.f32.mrb[0].mxu0
        %v1202 = vadd.f32 %v1039, %v1201
        %1203 = vmatprep.mubr.f32.mxu0 %v889
        %1204 = vmatmul.mubr.f32.gmra.mrb[0].mxu0 %v888
        %v1205 = vpop.f32.mrb[0].mxu0
        %v1206 = vadd.f32 %v1035, %v1205
        %v1207 = vpop.f32.mrb[0].mxu0
        %v1208 = vadd.f32 %v1039, %v1207
        %1209 = vmatprep.mubr.f32.mxu0 %v891
        %1210 = vmatmul.mubr.f32.gmra.mrb[0].mxu0 %v890
        %v1211 = vpop.f32.mrb[0].mxu0
        %v1212 = vadd.f32 %v1035, %v1211
        %v1213 = vpop.f32.mrb[0].mxu0
        %v1214 = vadd.f32 %v1039, %v1213
        %1215 = vmatprep.mubr.f32.mxu0 %v893
        %1216 = vmatmul.mubr.f32.gmra.mrb[0].mxu0 %v892
        %v1217 = vpop.f32.mrb[0].mxu0
        %v1218 = vadd.f32 %v1035, %v1217
        %v1219 = vpop.f32.mrb[0].mxu0
        %v1220 = vadd.f32 %v1039, %v1219
        %1221 = vdwg.mxu0
        %v1222 = vmax.f32 %v1111, 0.0
        %v1223 = vmax.f32 %v1113, 0.0
        %v1224 = vmax.f32 %v1200, 0.0
        %v1225 = vmax.f32 %v1202, 0.0
        %v1226 = vmax.f32 %v1117, 0.0
        %v1227 = vmax.f32 %v1119, 0.0
        %v1228 = vmax.f32 %v1206, 0.0
        %v1229 = vmax.f32 %v1208, 0.0
        %v1230 = vmax.f32 %v1123, 0.0
        %v1231 = vmax.f32 %v1125, 0.0
        %v1232 = vmax.f32 %v1212, 0.0
        %v1233 = vmax.f32 %v1214, 0.0
        %v1234 = vmax.f32 %v1129, 0.0
        %v1235 = vmax.f32 %v1131, 0.0
        %v1236 = vmax.f32 %v1218, 0.0
        %v1237 = vmax.f32 %v1220, 0.0
        %v1238 = vld [vmem:[#allocation16] sm:$0xff]
        %v1239 = vld [vmem:[#allocation16 + $0x8] sm:$0xff]
        %v1240 = vld [vmem:[#allocation16 + $0x10] sm:$0xff]
        %v1241 = vld [vmem:[#allocation16 + $0x18] sm:$0xff]
        %v1242 = vld [vmem:[#allocation16 + $0x20] sm:$0xff]
        %v1243 = vld [vmem:[#allocation16 + $0x28] sm:$0xff]
        %v1244 = vld [vmem:[#allocation16 + $0x30] sm:$0xff]
        %v1245 = vld [vmem:[#allocation16 + $0x38] sm:$0xff]
        %v1246 = vld [vmem:[#allocation16 + $0x40] sm:$0xff]
        %v1247 = vld [vmem:[#allocation16 + $0x48] sm:$0xff]
        %v1248 = vld [vmem:[#allocation16 + $0x50] sm:$0xff]
        %v1249 = vld [vmem:[#allocation16 + $0x58] sm:$0xff]
        %v1250 = vld [vmem:[#allocation16 + $0x60] sm:$0xff]
        %v1251 = vld [vmem:[#allocation16 + $0x68] sm:$0xff]
        %v1252 = vld [vmem:[#allocation16 + $0x70] sm:$0xff]
        %v1253 = vld [vmem:[#allocation16 + $0x78] sm:$0xff]
        %v1254 = vld [vmem:[#allocation16 + $0x80] sm:$0xff]
        %v1255 = vld [vmem:[#allocation16 + $0x88] sm:$0xff]
        %v1256 = vld [vmem:[#allocation16 + $0x90] sm:$0xff]
        %v1257 = vld [vmem:[#allocation16 + $0x98] sm:$0xff]
        %v1258 = vld [vmem:[#allocation16 + $0xa0] sm:$0xff]
        %v1259 = vld [vmem:[#allocation16 + $0xa8] sm:$0xff]
        %v1260 = vld [vmem:[#allocation16 + $0xb0] sm:$0xff]
        %v1261 = vld [vmem:[#allocation16 + $0xb8] sm:$0xff]
        %v1262 = vld [vmem:[#allocation16 + $0xc0] sm:$0xff]
        %v1263 = vld [vmem:[#allocation16 + $0xc8] sm:$0xff]
        %v1264 = vld [vmem:[#allocation16 + $0xd0] sm:$0xff]
        %v1265 = vld [vmem:[#allocation16 + $0xd8] sm:$0xff]
        %v1266 = vld [vmem:[#allocation16 + $0xe0] sm:$0xff]
        %v1267 = vld [vmem:[#allocation16 + $0xe8] sm:$0xff]
        %v1268 = vld [vmem:[#allocation16 + $0xf0] sm:$0xff]
        %v1269 = vld [vmem:[#allocation16 + $0xf8] sm:$0xff]
        %v1270 = vld [vmem:[#allocation16 + $0x100] sm:$0xff]
        %v1271 = vld [vmem:[#allocation16 + $0x108] sm:$0xff]
        %v1272 = vld [vmem:[#allocation16 + $0x110] sm:$0xff]
        %v1273 = vld [vmem:[#allocation16 + $0x118] sm:$0xff]
        %v1274 = vld [vmem:[#allocation16 + $0x120] sm:$0xff]
        %v1275 = vld [vmem:[#allocation16 + $0x128] sm:$0xff]
        %v1276 = vld [vmem:[#allocation16 + $0x130] sm:$0xff]
        %v1277 = vld [vmem:[#allocation16 + $0x138] sm:$0xff]
        %v1278 = vld [vmem:[#allocation16 + $0x140] sm:$0xff]
        %v1279 = vld [vmem:[#allocation16 + $0x148] sm:$0xff]
        %v1280 = vld [vmem:[#allocation16 + $0x150] sm:$0xff]
        %v1281 = vld [vmem:[#allocation16 + $0x158] sm:$0xff]
        %v1282 = vld [vmem:[#allocation16 + $0x160] sm:$0xff]
        %v1283 = vld [vmem:[#allocation16 + $0x168] sm:$0xff]
        %v1284 = vld [vmem:[#allocation16 + $0x170] sm:$0xff]
        %v1285 = vld [vmem:[#allocation16 + $0x178] sm:$0xff]
        %v1286 = vld [vmem:[#allocation16 + $0x180] sm:$0xff]
        %v1287 = vld [vmem:[#allocation16 + $0x188] sm:$0xff]
        %v1288 = vld [vmem:[#allocation16 + $0x190] sm:$0xff]
        %v1289 = vld [vmem:[#allocation16 + $0x198] sm:$0xff]
        %v1290 = vld [vmem:[#allocation16 + $0x1a0] sm:$0xff]
        %v1291 = vld [vmem:[#allocation16 + $0x1a8] sm:$0xff]
        %v1292 = vld [vmem:[#allocation16 + $0x1b0] sm:$0xff]
        %v1293 = vld [vmem:[#allocation16 + $0x1b8] sm:$0xff]
        %v1294 = vld [vmem:[#allocation16 + $0x1c0] sm:$0xff]
        %v1295 = vld [vmem:[#allocation16 + $0x1c8] sm:$0xff]
        %v1296 = vld [vmem:[#allocation16 + $0x1d0] sm:$0xff]
        %v1297 = vld [vmem:[#allocation16 + $0x1d8] sm:$0xff]
        %v1298 = vld [vmem:[#allocation16 + $0x1e0] sm:$0xff]
        %v1299 = vld [vmem:[#allocation16 + $0x1e8] sm:$0xff]
        %v1300 = vld [vmem:[#allocation16 + $0x1f0] sm:$0xff]
        %v1301 = vld [vmem:[#allocation16 + $0x1f8] sm:$0xff]
        %v1302 = vld [vmem:[#allocation16 + $0x200] sm:$0xff]
        %v1303 = vld [vmem:[#allocation16 + $0x208] sm:$0xff]
        %v1304 = vld [vmem:[#allocation16 + $0x210] sm:$0xff]
        %v1305 = vld [vmem:[#allocation16 + $0x218] sm:$0xff]
        %v1306 = vld [vmem:[#allocation16 + $0x220] sm:$0xff]
        %v1307 = vld [vmem:[#allocation16 + $0x228] sm:$0xff]
        %v1308 = vld [vmem:[#allocation16 + $0x230] sm:$0xff]
        %v1309 = vld [vmem:[#allocation16 + $0x238] sm:$0xff]
        %v1310 = vld [vmem:[#allocation16 + $0x240] sm:$0xff]
        %v1311 = vld [vmem:[#allocation16 + $0x248] sm:$0xff]
        %v1312 = vld [vmem:[#allocation16 + $0x250] sm:$0xff]
        %v1313 = vld [vmem:[#allocation16 + $0x258] sm:$0xff]
        %v1314 = vld [vmem:[#allocation16 + $0x260] sm:$0xff]
        %v1315 = vld [vmem:[#allocation16 + $0x268] sm:$0xff]
        %v1316 = vld [vmem:[#allocation16 + $0x270] sm:$0xff]
        %v1317 = vld [vmem:[#allocation16 + $0x278] sm:$0xff]
        %v1318 = vld [vmem:[#allocation16 + $0x280] sm:$0xff]
        %v1319 = vld [vmem:[#allocation16 + $0x288] sm:$0xff]
        %v1320 = vld [vmem:[#allocation16 + $0x290] sm:$0xff]
        %v1321 = vld [vmem:[#allocation16 + $0x298] sm:$0xff]
        %v1322 = vld [vmem:[#allocation16 + $0x2a0] sm:$0xff]
        %v1323 = vld [vmem:[#allocation16 + $0x2a8] sm:$0xff]
        %v1324 = vld [vmem:[#allocation16 + $0x2b0] sm:$0xff]
        %v1325 = vld [vmem:[#allocation16 + $0x2b8] sm:$0xff]
        %v1326 = vld [vmem:[#allocation16 + $0x2c0] sm:$0xff]
        %v1327 = vld [vmem:[#allocation16 + $0x2c8] sm:$0xff]
        %v1328 = vld [vmem:[#allocation16 + $0x2d0] sm:$0xff]
        %v1329 = vld [vmem:[#allocation16 + $0x2d8] sm:$0xff]
        %v1330 = vld [vmem:[#allocation16 + $0x2e0] sm:$0xff]
        %v1331 = vld [vmem:[#allocation16 + $0x2e8] sm:$0xff]
        %v1332 = vld [vmem:[#allocation16 + $0x2f0] sm:$0xff]
        %v1333 = vld [vmem:[#allocation16 + $0x2f8] sm:$0xff]
        %v1334 = vld [vmem:[#allocation16 + $0x300] sm:$0xff]
        %v1335 = vld [vmem:[#allocation16 + $0x308] sm:$0xff]
        %v1336 = vld [vmem:[#allocation16 + $0x310] sm:$0xff]
        %v1337 = vld [vmem:[#allocation16 + $0x318] sm:$0xff]
        %v1338 = vld [vmem:[#allocation16 + $0x320] sm:$0xff]
        %v1339 = vld [vmem:[#allocation16 + $0x328] sm:$0xff]
        %v1340 = vld [vmem:[#allocation16 + $0x330] sm:$0xff]
        %v1341 = vld [vmem:[#allocation16 + $0x338] sm:$0xff]
        %v1342 = vld [vmem:[#allocation16 + $0x340] sm:$0xff]
        %v1343 = vld [vmem:[#allocation16 + $0x348] sm:$0xff]
        %v1344 = vld [vmem:[#allocation16 + $0x350] sm:$0xff]
        %v1345 = vld [vmem:[#allocation16 + $0x358] sm:$0xff]
        %v1346 = vld [vmem:[#allocation16 + $0x360] sm:$0xff]
        %v1347 = vld [vmem:[#allocation16 + $0x368] sm:$0xff]
        %v1348 = vld [vmem:[#allocation16 + $0x370] sm:$0xff]
        %v1349 = vld [vmem:[#allocation16 + $0x378] sm:$0xff]
        %v1350 = vld [vmem:[#allocation16 + $0x380] sm:$0xff]
        %v1351 = vld [vmem:[#allocation16 + $0x388] sm:$0xff]
        %v1352 = vld [vmem:[#allocation16 + $0x390] sm:$0xff]
        %v1353 = vld [vmem:[#allocation16 + $0x398] sm:$0xff]
        %v1354 = vld [vmem:[#allocation16 + $0x3a0] sm:$0xff]
        %v1355 = vld [vmem:[#allocation16 + $0x3a8] sm:$0xff]
        %v1356 = vld [vmem:[#allocation16 + $0x3b0] sm:$0xff]
        %v1357 = vld [vmem:[#allocation16 + $0x3b8] sm:$0xff]
        %v1358 = vld [vmem:[#allocation16 + $0x3c0] sm:$0xff]
        %v1359 = vld [vmem:[#allocation16 + $0x3c8] sm:$0xff]
        %v1360 = vld [vmem:[#allocation16 + $0x3d0] sm:$0xff]
        %v1361 = vld [vmem:[#allocation16 + $0x3d8] sm:$0xff]
        %v1362 = vld [vmem:[#allocation16 + $0x3e0] sm:$0xff]
        %v1363 = vld [vmem:[#allocation16 + $0x3e8] sm:$0xff]
        %v1364 = vld [vmem:[#allocation16 + $0x3f0] sm:$0xff]
        %v1365 = vld [vmem:[#allocation16 + $0x3f8] sm:$0xff]
        %v1366 = vld [vmem:[#allocation16 + $0x400] sm:$0xff]
        %v1367 = vld [vmem:[#allocation16 + $0x408] sm:$0xff]
        %v1368 = vld [vmem:[#allocation16 + $0x410] sm:$0xff]
        %v1369 = vld [vmem:[#allocation16 + $0x418] sm:$0xff]
        %v1370 = vld [vmem:[#allocation16 + $0x420] sm:$0xff]
        %v1371 = vld [vmem:[#allocation16 + $0x428] sm:$0xff]
        %v1372 = vld [vmem:[#allocation16 + $0x430] sm:$0xff]
        %v1373 = vld [vmem:[#allocation16 + $0x438] sm:$0xff]
        %v1374 = vld [vmem:[#allocation16 + $0x440] sm:$0xff]
        %v1375 = vld [vmem:[#allocation16 + $0x448] sm:$0xff]
        %v1376 = vld [vmem:[#allocation16 + $0x450] sm:$0xff]
        %v1377 = vld [vmem:[#allocation16 + $0x458] sm:$0xff]
        %v1378 = vld [vmem:[#allocation16 + $0x460] sm:$0xff]
        %v1379 = vld [vmem:[#allocation16 + $0x468] sm:$0xff]
        %v1380 = vld [vmem:[#allocation16 + $0x470] sm:$0xff]
        %v1381 = vld [vmem:[#allocation16 + $0x478] sm:$0xff]
        %v1382 = vld [vmem:[#allocation16 + $0x480] sm:$0xff]
        %v1383 = vld [vmem:[#allocation16 + $0x488] sm:$0xff]
        %v1384 = vld [vmem:[#allocation16 + $0x490] sm:$0xff]
        %v1385 = vld [vmem:[#allocation16 + $0x498] sm:$0xff]
        %v1386 = vld [vmem:[#allocation16 + $0x4a0] sm:$0xff]
        %v1387 = vld [vmem:[#allocation16 + $0x4a8] sm:$0xff]
        %v1388 = vld [vmem:[#allocation16 + $0x4b0] sm:$0xff]
        %v1389 = vld [vmem:[#allocation16 + $0x4b8] sm:$0xff]
        %v1390 = vld [vmem:[#allocation16 + $0x4c0] sm:$0xff]
        %v1391 = vld [vmem:[#allocation16 + $0x4c8] sm:$0xff]
        %v1392 = vld [vmem:[#allocation16 + $0x4d0] sm:$0xff]
        %v1393 = vld [vmem:[#allocation16 + $0x4d8] sm:$0xff]
        %v1394 = vld [vmem:[#allocation16 + $0x4e0] sm:$0xff]
        %v1395 = vld [vmem:[#allocation16 + $0x4e8] sm:$0xff]
        %v1396 = vld [vmem:[#allocation16 + $0x4f0] sm:$0xff]
        %v1397 = vld [vmem:[#allocation16 + $0x4f8] sm:$0xff]
        %v1398 = vld [vmem:[#allocation16 + $0x500] sm:$0xff]
        %v1399 = vld [vmem:[#allocation16 + $0x508] sm:$0xff]
        %v1400 = vld [vmem:[#allocation16 + $0x510] sm:$0xff]
        %v1401 = vld [vmem:[#allocation16 + $0x518] sm:$0xff]
        %v1402 = vld [vmem:[#allocation16 + $0x520] sm:$0xff]
        %v1403 = vld [vmem:[#allocation16 + $0x528] sm:$0xff]
        %v1404 = vld [vmem:[#allocation16 + $0x530] sm:$0xff]
        %v1405 = vld [vmem:[#allocation16 + $0x538] sm:$0xff]
        %v1406 = vld [vmem:[#allocation16 + $0x540] sm:$0xff]
        %v1407 = vld [vmem:[#allocation16 + $0x548] sm:$0xff]
        %v1408 = vld [vmem:[#allocation16 + $0x550] sm:$0xff]
        %v1409 = vld [vmem:[#allocation16 + $0x558] sm:$0xff]
        %v1410 = vld [vmem:[#allocation16 + $0x560] sm:$0xff]
        %v1411 = vld [vmem:[#allocation16 + $0x568] sm:$0xff]
        %v1412 = vld [vmem:[#allocation16 + $0x570] sm:$0xff]
        %v1413 = vld [vmem:[#allocation16 + $0x578] sm:$0xff]
        %v1414 = vld [vmem:[#allocation16 + $0x580] sm:$0xff]
        %v1415 = vld [vmem:[#allocation16 + $0x588] sm:$0xff]
        %v1416 = vld [vmem:[#allocation16 + $0x590] sm:$0xff]
        %v1417 = vld [vmem:[#allocation16 + $0x598] sm:$0xff]
        %v1418 = vld [vmem:[#allocation16 + $0x5a0] sm:$0xff]
        %v1419 = vld [vmem:[#allocation16 + $0x5a8] sm:$0xff]
        %v1420 = vld [vmem:[#allocation16 + $0x5b0] sm:$0xff]
        %v1421 = vld [vmem:[#allocation16 + $0x5b8] sm:$0xff]
        %v1422 = vld [vmem:[#allocation16 + $0x5c0] sm:$0xff]
        %v1423 = vld [vmem:[#allocation16 + $0x5c8] sm:$0xff]
        %v1424 = vld [vmem:[#allocation16 + $0x5d0] sm:$0xff]
        %v1425 = vld [vmem:[#allocation16 + $0x5d8] sm:$0xff]
        %v1426 = vld [vmem:[#allocation16 + $0x5e0] sm:$0xff]
        %v1427 = vld [vmem:[#allocation16 + $0x5e8] sm:$0xff]
        %v1428 = vld [vmem:[#allocation16 + $0x5f0] sm:$0xff]
        %v1429 = vld [vmem:[#allocation16 + $0x5f8] sm:$0xff]
        %v1430 = vld [vmem:[#allocation16 + $0x600] sm:$0xff]
        %v1431 = vld [vmem:[#allocation16 + $0x608] sm:$0xff]
        %v1432 = vld [vmem:[#allocation16 + $0x610] sm:$0xff]
        %v1433 = vld [vmem:[#allocation16 + $0x618] sm:$0xff]
        %v1434 = vld [vmem:[#allocation16 + $0x620] sm:$0xff]
        %v1435 = vld [vmem:[#allocation16 + $0x628] sm:$0xff]
        %v1436 = vld [vmem:[#allocation16 + $0x630] sm:$0xff]
        %v1437 = vld [vmem:[#allocation16 + $0x638] sm:$0xff]
        %v1438 = vld [vmem:[#allocation16 + $0x640] sm:$0xff]
        %v1439 = vld [vmem:[#allocation16 + $0x648] sm:$0xff]
        %v1440 = vld [vmem:[#allocation16 + $0x650] sm:$0xff]
        %v1441 = vld [vmem:[#allocation16 + $0x658] sm:$0xff]
        %v1442 = vld [vmem:[#allocation16 + $0x660] sm:$0xff]
        %v1443 = vld [vmem:[#allocation16 + $0x668] sm:$0xff]
        %v1444 = vld [vmem:[#allocation16 + $0x670] sm:$0xff]
        %v1445 = vld [vmem:[#allocation16 + $0x678] sm:$0xff]
        %v1446 = vld [vmem:[#allocation16 + $0x680] sm:$0xff]
        %v1447 = vld [vmem:[#allocation16 + $0x688] sm:$0xff]
        %v1448 = vld [vmem:[#allocation16 + $0x690] sm:$0xff]
        %v1449 = vld [vmem:[#allocation16 + $0x698] sm:$0xff]
        %v1450 = vld [vmem:[#allocation16 + $0x6a0] sm:$0xff]
        %v1451 = vld [vmem:[#allocation16 + $0x6a8] sm:$0xff]
        %v1452 = vld [vmem:[#allocation16 + $0x6b0] sm:$0xff]
        %v1453 = vld [vmem:[#allocation16 + $0x6b8] sm:$0xff]
        %v1454 = vld [vmem:[#allocation16 + $0x6c0] sm:$0xff]
        %v1455 = vld [vmem:[#allocation16 + $0x6c8] sm:$0xff]
        %v1456 = vld [vmem:[#allocation16 + $0x6d0] sm:$0xff]
        %v1457 = vld [vmem:[#allocation16 + $0x6d8] sm:$0xff]
        %v1458 = vld [vmem:[#allocation16 + $0x6e0] sm:$0xff]
        %v1459 = vld [vmem:[#allocation16 + $0x6e8] sm:$0xff]
        %v1460 = vld [vmem:[#allocation16 + $0x6f0] sm:$0xff]
        %v1461 = vld [vmem:[#allocation16 + $0x6f8] sm:$0xff]
        %v1462 = vld [vmem:[#allocation16 + $0x700] sm:$0xff]
        %v1463 = vld [vmem:[#allocation16 + $0x708] sm:$0xff]
        %v1464 = vld [vmem:[#allocation16 + $0x710] sm:$0xff]
        %v1465 = vld [vmem:[#allocation16 + $0x718] sm:$0xff]
        %v1466 = vld [vmem:[#allocation16 + $0x720] sm:$0xff]
        %v1467 = vld [vmem:[#allocation16 + $0x728] sm:$0xff]
        %v1468 = vld [vmem:[#allocation16 + $0x730] sm:$0xff]
        %v1469 = vld [vmem:[#allocation16 + $0x738] sm:$0xff]
        %v1470 = vld [vmem:[#allocation16 + $0x740] sm:$0xff]
        %v1471 = vld [vmem:[#allocation16 + $0x748] sm:$0xff]
        %v1472 = vld [vmem:[#allocation16 + $0x750] sm:$0xff]
        %v1473 = vld [vmem:[#allocation16 + $0x758] sm:$0xff]
        %v1474 = vld [vmem:[#allocation16 + $0x760] sm:$0xff]
        %v1475 = vld [vmem:[#allocation16 + $0x768] sm:$0xff]
        %v1476 = vld [vmem:[#allocation16 + $0x770] sm:$0xff]
        %v1477 = vld [vmem:[#allocation16 + $0x778] sm:$0xff]
        %v1478 = vld [vmem:[#allocation16 + $0x780] sm:$0xff]
        %v1479 = vld [vmem:[#allocation16 + $0x788] sm:$0xff]
        %v1480 = vld [vmem:[#allocation16 + $0x790] sm:$0xff]
        %v1481 = vld [vmem:[#allocation16 + $0x798] sm:$0xff]
        %v1482 = vld [vmem:[#allocation16 + $0x7a0] sm:$0xff]
        %v1483 = vld [vmem:[#allocation16 + $0x7a8] sm:$0xff]
        %v1484 = vld [vmem:[#allocation16 + $0x7b0] sm:$0xff]
        %v1485 = vld [vmem:[#allocation16 + $0x7b8] sm:$0xff]
        %v1486 = vld [vmem:[#allocation16 + $0x7c0] sm:$0xff]
        %v1487 = vld [vmem:[#allocation16 + $0x7c8] sm:$0xff]
        %v1488 = vld [vmem:[#allocation16 + $0x7d0] sm:$0xff]
        %v1489 = vld [vmem:[#allocation16 + $0x7d8] sm:$0xff]
        %v1490 = vld [vmem:[#allocation16 + $0x7e0] sm:$0xff]
        %v1491 = vld [vmem:[#allocation16 + $0x7e8] sm:$0xff]
        %v1492 = vld [vmem:[#allocation16 + $0x7f0] sm:$0xff]
        %v1493 = vld [vmem:[#allocation16 + $0x7f8] sm:$0xff]
        %v1494 = vld [vmem:[#allocation16 + $0x800] sm:$0xff]
        %v1495 = vld [vmem:[#allocation16 + $0x808] sm:$0xff]
        %v1496 = vld [vmem:[#allocation16 + $0x810] sm:$0xff]
        %v1497 = vld [vmem:[#allocation16 + $0x818] sm:$0xff]
        %v1498 = vld [vmem:[#allocation16 + $0x820] sm:$0xff]
        %v1499 = vld [vmem:[#allocation16 + $0x828] sm:$0xff]
        %v1500 = vld [vmem:[#allocation16 + $0x830] sm:$0xff]
        %v1501 = vld [vmem:[#allocation16 + $0x838] sm:$0xff]
        %v1502 = vld [vmem:[#allocation16 + $0x840] sm:$0xff]
        %v1503 = vld [vmem:[#allocation16 + $0x848] sm:$0xff]
        %v1504 = vld [vmem:[#allocation16 + $0x850] sm:$0xff]
        %v1505 = vld [vmem:[#allocation16 + $0x858] sm:$0xff]
        %v1506 = vld [vmem:[#allocation16 + $0x860] sm:$0xff]
        %v1507 = vld [vmem:[#allocation16 + $0x868] sm:$0xff]
        %v1508 = vld [vmem:[#allocation16 + $0x870] sm:$0xff]
        %v1509 = vld [vmem:[#allocation16 + $0x878] sm:$0xff]
        %v1510 = vld [vmem:[#allocation16 + $0x880] sm:$0xff]
        %v1511 = vld [vmem:[#allocation16 + $0x888] sm:$0xff]
        %v1512 = vld [vmem:[#allocation16 + $0x890] sm:$0xff]
        %v1513 = vld [vmem:[#allocation16 + $0x898] sm:$0xff]
        %v1514 = vld [vmem:[#allocation16 + $0x8a0] sm:$0xff]
        %v1515 = vld [vmem:[#allocation16 + $0x8a8] sm:$0xff]
        %v1516 = vld [vmem:[#allocation16 + $0x8b0] sm:$0xff]
        %v1517 = vld [vmem:[#allocation16 + $0x8b8] sm:$0xff]
        %v1518 = vld [vmem:[#allocation16 + $0x8c0] sm:$0xff]
        %v1519 = vld [vmem:[#allocation16 + $0x8c8] sm:$0xff]
        %v1520 = vld [vmem:[#allocation16 + $0x8d0] sm:$0xff]
        %v1521 = vld [vmem:[#allocation16 + $0x8d8] sm:$0xff]
        %v1522 = vld [vmem:[#allocation16 + $0x8e0] sm:$0xff]
        %v1523 = vld [vmem:[#allocation16 + $0x8e8] sm:$0xff]
        %v1524 = vld [vmem:[#allocation16 + $0x8f0] sm:$0xff]
        %v1525 = vld [vmem:[#allocation16 + $0x8f8] sm:$0xff]
        %v1526 = vld [vmem:[#allocation16 + $0x900] sm:$0xff]
        %v1527 = vld [vmem:[#allocation16 + $0x908] sm:$0xff]
        %v1528 = vld [vmem:[#allocation16 + $0x910] sm:$0xff]
        %v1529 = vld [vmem:[#allocation16 + $0x918] sm:$0xff]
        %v1530 = vld [vmem:[#allocation16 + $0x920] sm:$0xff]
        %v1531 = vld [vmem:[#allocation16 + $0x928] sm:$0xff]
        %v1532 = vld [vmem:[#allocation16 + $0x930] sm:$0xff]
        %v1533 = vld [vmem:[#allocation16 + $0x938] sm:$0xff]
        %v1534 = vld [vmem:[#allocation16 + $0x940] sm:$0xff]
        %v1535 = vld [vmem:[#allocation16 + $0x948] sm:$0xff]
        %v1536 = vld [vmem:[#allocation16 + $0x950] sm:$0xff]
        %v1537 = vld [vmem:[#allocation16 + $0x958] sm:$0xff]
        %v1538 = vld [vmem:[#allocation16 + $0x960] sm:$0xff]
        %v1539 = vld [vmem:[#allocation16 + $0x968] sm:$0xff]
        %v1540 = vld [vmem:[#allocation16 + $0x970] sm:$0xff]
        %v1541 = vld [vmem:[#allocation16 + $0x978] sm:$0xff]
        %v1542 = vld [vmem:[#allocation16 + $0x980] sm:$0xff]
        %v1543 = vld [vmem:[#allocation16 + $0x988] sm:$0xff]
        %v1544 = vld [vmem:[#allocation16 + $0x990] sm:$0xff]
        %v1545 = vld [vmem:[#allocation16 + $0x998] sm:$0xff]
        %v1546 = vld [vmem:[#allocation16 + $0x9a0] sm:$0xff]
        %v1547 = vld [vmem:[#allocation16 + $0x9a8] sm:$0xff]
        %v1548 = vld [vmem:[#allocation16 + $0x9b0] sm:$0xff]
        %v1549 = vld [vmem:[#allocation16 + $0x9b8] sm:$0xff]
        %v1550 = vld [vmem:[#allocation16 + $0x9c0] sm:$0xff]
        %v1551 = vld [vmem:[#allocation16 + $0x9c8] sm:$0xff]
        %v1552 = vld [vmem:[#allocation16 + $0x9d0] sm:$0xff]
        %v1553 = vld [vmem:[#allocation16 + $0x9d8] sm:$0xff]
        %v1554 = vld [vmem:[#allocation16 + $0x9e0] sm:$0xff]
        %v1555 = vld [vmem:[#allocation16 + $0x9e8] sm:$0xff]
        %v1556 = vld [vmem:[#allocation16 + $0x9f0] sm:$0xff]
        %v1557 = vld [vmem:[#allocation16 + $0x9f8] sm:$0xff]
        %v1558 = vld [vmem:[#allocation16 + $0xa00] sm:$0xff]
        %v1559 = vld [vmem:[#allocation16 + $0xa08] sm:$0xff]
        %v1560 = vld [vmem:[#allocation16 + $0xa10] sm:$0xff]
        %v1561 = vld [vmem:[#allocation16 + $0xa18] sm:$0xff]
        %v1562 = vld [vmem:[#allocation16 + $0xa20] sm:$0xff]
        %v1563 = vld [vmem:[#allocation16 + $0xa28] sm:$0xff]
        %v1564 = vld [vmem:[#allocation16 + $0xa30] sm:$0xff]
        %v1565 = vld [vmem:[#allocation16 + $0xa38] sm:$0xff]
        %v1566 = vld [vmem:[#allocation16 + $0xa40] sm:$0xff]
        %v1567 = vld [vmem:[#allocation16 + $0xa48] sm:$0xff]
        %v1568 = vld [vmem:[#allocation16 + $0xa50] sm:$0xff]
        %v1569 = vld [vmem:[#allocation16 + $0xa58] sm:$0xff]
        %v1570 = vld [vmem:[#allocation16 + $0xa60] sm:$0xff]
        %v1571 = vld [vmem:[#allocation16 + $0xa68] sm:$0xff]
        %v1572 = vld [vmem:[#allocation16 + $0xa70] sm:$0xff]
        %v1573 = vld [vmem:[#allocation16 + $0xa78] sm:$0xff]
        %v1574 = vld [vmem:[#allocation16 + $0xa80] sm:$0xff]
        %v1575 = vld [vmem:[#allocation16 + $0xa88] sm:$0xff]
        %v1576 = vld [vmem:[#allocation16 + $0xa90] sm:$0xff]
        %v1577 = vld [vmem:[#allocation16 + $0xa98] sm:$0xff]
        %v1578 = vld [vmem:[#allocation16 + $0xaa0] sm:$0xff]
        %v1579 = vld [vmem:[#allocation16 + $0xaa8] sm:$0xff]
        %v1580 = vld [vmem:[#allocation16 + $0xab0] sm:$0xff]
        %v1581 = vld [vmem:[#allocation16 + $0xab8] sm:$0xff]
        %v1582 = vld [vmem:[#allocation16 + $0xac0] sm:$0xff]
        %v1583 = vld [vmem:[#allocation16 + $0xac8] sm:$0xff]
        %v1584 = vld [vmem:[#allocation16 + $0xad0] sm:$0xff]
        %v1585 = vld [vmem:[#allocation16 + $0xad8] sm:$0xff]
        %v1586 = vld [vmem:[#allocation16 + $0xae0] sm:$0xff]
        %v1587 = vld [vmem:[#allocation16 + $0xae8] sm:$0xff]
        %v1588 = vld [vmem:[#allocation16 + $0xaf0] sm:$0xff]
        %v1589 = vld [vmem:[#allocation16 + $0xaf8] sm:$0xff]
        %v1590 = vld [vmem:[#allocation16 + $0xb00] sm:$0xff]
        %v1591 = vld [vmem:[#allocation16 + $0xb08] sm:$0xff]
        %v1592 = vld [vmem:[#allocation16 + $0xb10] sm:$0xff]
        %v1593 = vld [vmem:[#allocation16 + $0xb18] sm:$0xff]
        %v1594 = vld [vmem:[#allocation16 + $0xb20] sm:$0xff]
        %v1595 = vld [vmem:[#allocation16 + $0xb28] sm:$0xff]
        %v1596 = vld [vmem:[#allocation16 + $0xb30] sm:$0xff]
        %v1597 = vld [vmem:[#allocation16 + $0xb38] sm:$0xff]
        %v1598 = vld [vmem:[#allocation16 + $0xb40] sm:$0xff]
        %v1599 = vld [vmem:[#allocation16 + $0xb48] sm:$0xff]
        %v1600 = vld [vmem:[#allocation16 + $0xb50] sm:$0xff]
        %v1601 = vld [vmem:[#allocation16 + $0xb58] sm:$0xff]
        %v1602 = vld [vmem:[#allocation16 + $0xb60] sm:$0xff]
        %v1603 = vld [vmem:[#allocation16 + $0xb68] sm:$0xff]
        %v1604 = vld [vmem:[#allocation16 + $0xb70] sm:$0xff]
        %v1605 = vld [vmem:[#allocation16 + $0xb78] sm:$0xff]
        %v1606 = vld [vmem:[#allocation16 + $0xb80] sm:$0xff]
        %v1607 = vld [vmem:[#allocation16 + $0xb88] sm:$0xff]
        %v1608 = vld [vmem:[#allocation16 + $0xb90] sm:$0xff]
        %v1609 = vld [vmem:[#allocation16 + $0xb98] sm:$0xff]
        %v1610 = vld [vmem:[#allocation16 + $0xba0] sm:$0xff]
        %v1611 = vld [vmem:[#allocation16 + $0xba8] sm:$0xff]
        %v1612 = vld [vmem:[#allocation16 + $0xbb0] sm:$0xff]
        %v1613 = vld [vmem:[#allocation16 + $0xbb8] sm:$0xff]
        %v1614 = vld [vmem:[#allocation16 + $0xbc0] sm:$0xff]
        %v1615 = vld [vmem:[#allocation16 + $0xbc8] sm:$0xff]
        %v1616 = vld [vmem:[#allocation16 + $0xbd0] sm:$0xff]
        %v1617 = vld [vmem:[#allocation16 + $0xbd8] sm:$0xff]
        %v1618 = vld [vmem:[#allocation16 + $0xbe0] sm:$0xff]
        %v1619 = vld [vmem:[#allocation16 + $0xbe8] sm:$0xff]
        %v1620 = vld [vmem:[#allocation16 + $0xbf0] sm:$0xff]
        %v1621 = vld [vmem:[#allocation16 + $0xbf8] sm:$0xff]
        %v1622 = vld [vmem:[#allocation16 + $0xc00] sm:$0xff]
        %v1623 = vld [vmem:[#allocation16 + $0xc08] sm:$0xff]
        %v1624 = vld [vmem:[#allocation16 + $0xc10] sm:$0xff]
        %v1625 = vld [vmem:[#allocation16 + $0xc18] sm:$0xff]
        %v1626 = vld [vmem:[#allocation16 + $0xc20] sm:$0xff]
        %v1627 = vld [vmem:[#allocation16 + $0xc28] sm:$0xff]
        %v1628 = vld [vmem:[#allocation16 + $0xc30] sm:$0xff]
        %v1629 = vld [vmem:[#allocation16 + $0xc38] sm:$0xff]
        %v1630 = vld [vmem:[#allocation16 + $0xc40] sm:$0xff]
        %v1631 = vld [vmem:[#allocation16 + $0xc48] sm:$0xff]
        %v1632 = vld [vmem:[#allocation16 + $0xc50] sm:$0xff]
        %v1633 = vld [vmem:[#allocation16 + $0xc58] sm:$0xff]
        %v1634 = vld [vmem:[#allocation16 + $0xc60] sm:$0xff]
        %v1635 = vld [vmem:[#allocation16 + $0xc68] sm:$0xff]
        %v1636 = vld [vmem:[#allocation16 + $0xc70] sm:$0xff]
        %v1637 = vld [vmem:[#allocation16 + $0xc78] sm:$0xff]
        %v1638 = vld [vmem:[#allocation16 + $0xc80] sm:$0xff]
        %v1639 = vld [vmem:[#allocation16 + $0xc88] sm:$0xff]
        %v1640 = vld [vmem:[#allocation16 + $0xc90] sm:$0xff]
        %v1641 = vld [vmem:[#allocation16 + $0xc98] sm:$0xff]
        %v1642 = vld [vmem:[#allocation16 + $0xca0] sm:$0xff]
        %v1643 = vld [vmem:[#allocation16 + $0xca8] sm:$0xff]
        %v1644 = vld [vmem:[#allocation16 + $0xcb0] sm:$0xff]
        %v1645 = vld [vmem:[#allocation16 + $0xcb8] sm:$0xff]
        %v1646 = vld [vmem:[#allocation16 + $0xcc0] sm:$0xff]
        %v1647 = vld [vmem:[#allocation16 + $0xcc8] sm:$0xff]
        %v1648 = vld [vmem:[#allocation16 + $0xcd0] sm:$0xff]
        %v1649 = vld [vmem:[#allocation16 + $0xcd8] sm:$0xff]
        %v1650 = vld [vmem:[#allocation16 + $0xce0] sm:$0xff]
        %v1651 = vld [vmem:[#allocation16 + $0xce8] sm:$0xff]
        %v1652 = vld [vmem:[#allocation16 + $0xcf0] sm:$0xff]
        %v1653 = vld [vmem:[#allocation16 + $0xcf8] sm:$0xff]
        %v1654 = vld [vmem:[#allocation16 + $0xd00] sm:$0xff]
        %v1655 = vld [vmem:[#allocation16 + $0xd08] sm:$0xff]
        %v1656 = vld [vmem:[#allocation16 + $0xd10] sm:$0xff]
        %v1657 = vld [vmem:[#allocation16 + $0xd18] sm:$0xff]
        %v1658 = vld [vmem:[#allocation16 + $0xd20] sm:$0xff]
        %v1659 = vld [vmem:[#allocation16 + $0xd28] sm:$0xff]
        %v1660 = vld [vmem:[#allocation16 + $0xd30] sm:$0xff]
        %v1661 = vld [vmem:[#allocation16 + $0xd38] sm:$0xff]
        %v1662 = vld [vmem:[#allocation16 + $0xd40] sm:$0xff]
        %v1663 = vld [vmem:[#allocation16 + $0xd48] sm:$0xff]
        %v1664 = vld [vmem:[#allocation16 + $0xd50] sm:$0xff]
        %v1665 = vld [vmem:[#allocation16 + $0xd58] sm:$0xff]
        %v1666 = vld [vmem:[#allocation16 + $0xd60] sm:$0xff]
        %v1667 = vld [vmem:[#allocation16 + $0xd68] sm:$0xff]
        %v1668 = vld [vmem:[#allocation16 + $0xd70] sm:$0xff]
        %v1669 = vld [vmem:[#allocation16 + $0xd78] sm:$0xff]
        %v1670 = vld [vmem:[#allocation16 + $0xd80] sm:$0xff]
        %v1671 = vld [vmem:[#allocation16 + $0xd88] sm:$0xff]
        %v1672 = vld [vmem:[#allocation16 + $0xd90] sm:$0xff]
        %v1673 = vld [vmem:[#allocation16 + $0xd98] sm:$0xff]
        %v1674 = vld [vmem:[#allocation16 + $0xda0] sm:$0xff]
        %v1675 = vld [vmem:[#allocation16 + $0xda8] sm:$0xff]
        %v1676 = vld [vmem:[#allocation16 + $0xdb0] sm:$0xff]
        %v1677 = vld [vmem:[#allocation16 + $0xdb8] sm:$0xff]
        %v1678 = vld [vmem:[#allocation16 + $0xdc0] sm:$0xff]
        %v1679 = vld [vmem:[#allocation16 + $0xdc8] sm:$0xff]
        %v1680 = vld [vmem:[#allocation16 + $0xdd0] sm:$0xff]
        %v1681 = vld [vmem:[#allocation16 + $0xdd8] sm:$0xff]
        %v1682 = vld [vmem:[#allocation16 + $0xde0] sm:$0xff]
        %v1683 = vld [vmem:[#allocation16 + $0xde8] sm:$0xff]
        %v1684 = vld [vmem:[#allocation16 + $0xdf0] sm:$0xff]
        %v1685 = vld [vmem:[#allocation16 + $0xdf8] sm:$0xff]
        %v1686 = vld [vmem:[#allocation17] sm:$0xff]
        %v1688 = vlaneseq
        %v1689 = vshrl.u32 %v1688, 7
        %v1690 = vsub.s32 0, %v1689
        %v1691 = vrot.slane %v1686, %v1690
        %v1692 = vlaneseq
        %v1693 = vshrl.u32 %v1692, 7
        %v1694 = vsub.s32 1, %v1693
        %v1695 = vrot.slane %v1686, %v1694
        %v1696 = vlaneseq
        %v1697 = vshrl.u32 %v1696, 7
        %v1698 = vsub.s32 2, %v1697
        %v1699 = vrot.slane %v1686, %v1698
        %v1700 = vlaneseq
        %v1701 = vshrl.u32 %v1700, 7
        %v1702 = vsub.s32 3, %v1701
        %v1703 = vrot.slane %v1686, %v1702
        %v1704 = vlaneseq
        %v1705 = vshrl.u32 %v1704, 7
        %v1706 = vsub.s32 4, %v1705
        %v1707 = vrot.slane %v1686, %v1706
        %v1708 = vlaneseq
        %v1709 = vshrl.u32 %v1708, 7
        %v1710 = vsub.s32 5, %v1709
        %v1711 = vrot.slane %v1686, %v1710
        %v1712 = vlaneseq
        %v1713 = vshrl.u32 %v1712, 7
        %v1714 = vsub.s32 6, %v1713
        %v1715 = vrot.slane %v1686, %v1714
        %1723 = vmatprep.subr.mxu0 %v1239
        %1724 = vmatpush1.msra.mxu0 %v1238
        %1725 = vmatprep.subr.mxu0 %v1246
        %1726 = vmatpush1.msra.mxu0 %v1245
        %1727 = vmatprep.subr.mxu0 %v1253
        %1728 = vmatpush1.msra.mxu0 %v1252
        %1729 = vmatprep.subr.mxu0 %v1260
        %1730 = vmatpush1.msra.mxu0 %v1259
        %1731 = vmatprep.subr.mxu0 %v1267
        %1732 = vmatpush1.msra.mxu0 %v1266
        %1733 = vmatprep.subr.mxu0 %v1274
        %1734 = vmatpush1.msra.mxu0 %v1273
        %1735 = vmatprep.subr.mxu0 %v1281
        %1736 = vmatpush1.msra.mxu0 %v1280
        %1737 = vmatprep.subr.mxu0 %v1288
        %1738 = vmatpush1.msra.mxu0 %v1287
        %1739 = vmatprep.subr.mxu0 %v1295
        %1740 = vmatpush1.msra.mxu0 %v1294
        %1741 = vmatprep.subr.mxu0 %v1302
        %1742 = vmatpush1.msra.mxu0 %v1301
        %1743 = vmatprep.subr.mxu0 %v1309
        %1744 = vmatpush1.msra.mxu0 %v1308
        %1745 = vmatprep.subr.mxu0 %v1316
        %1746 = vmatpush1.msra.mxu0 %v1315
        %1747 = vmatprep.subr.mxu0 %v1323
        %1748 = vmatpush1.msra.mxu0 %v1322
        %1749 = vmatprep.subr.mxu0 %v1330
        %1750 = vmatpush1.msra.mxu0 %v1329
        %1751 = vmatprep.subr.mxu0 %v1337
        %1752 = vmatpush1.msra.mxu0 %v1336
        %1753 = vmatprep.subr.mxu0 %v1344
        %1754 = vmatpush1.msra.mxu0 %v1343
        %1755 = vmatprep.subr.mxu0 %v1351
        %1756 = vmatpush1.msra.mxu0 %v1350
        %1757 = vmatprep.subr.mxu0 %v1358
        %1758 = vmatpush1.msra.mxu0 %v1357
        %1759 = vmatprep.subr.mxu0 %v1365
        %1760 = vmatpush1.msra.mxu0 %v1364
        %1761 = vmatprep.subr.mxu0 %v1372
        %1762 = vmatpush1.msra.mxu0 %v1371
        %1763 = vmatprep.subr.mxu0 %v1379
        %1764 = vmatpush1.msra.mxu0 %v1378
        %1765 = vmatprep.subr.mxu0 %v1386
        %1766 = vmatpush1.msra.mxu0 %v1385
        %1767 = vmatprep.subr.mxu0 %v1393
        %1768 = vmatpush1.msra.mxu0 %v1392
        %1769 = vmatprep.subr.mxu0 %v1400
        %1770 = vmatpush1.msra.mxu0 %v1399
        %1771 = vmatprep.subr.mxu0 %v1407
        %1772 = vmatpush1.msra.mxu0 %v1406
        %1773 = vmatprep.subr.mxu0 %v1414
        %1774 = vmatpush1.msra.mxu0 %v1413
        %1775 = vmatprep.subr.mxu0 %v1421
        %1776 = vmatpush1.msra.mxu0 %v1420
        %1777 = vmatprep.subr.mxu0 %v1428
        %1778 = vmatpush1.msra.mxu0 %v1427
        %1779 = vmatprep.subr.mxu0 %v1435
        %1780 = vmatpush1.msra.mxu0 %v1434
        %1781 = vmatprep.subr.mxu0 %v1442
        %1782 = vmatpush1.msra.mxu0 %v1441
        %1783 = vmatprep.subr.mxu0 %v1449
        %1784 = vmatpush1.msra.mxu0 %v1448
        %1785 = vmatprep.subr.mxu0 %v1456
        %1786 = vmatpush1.msra.mxu0 %v1455
        %1787 = vmatprep.mubr.f32.mxu0 %v1223
        %1788 = vmatmul.mubr.f32.gmra.mrb[0].mxu0 %v1222
        %v1789 = vpop.f32.mrb[0].mxu0
        %v1790 = vadd.f32 %v1691, %v1789
        %v1791 = vpop.f32.mrb[0].mxu0
        %v1792 = vadd.f32 %v1695, %v1791
        %1793 = vmatprep.mubr.f32.mxu0 %v1227
        %1794 = vmatmul.mubr.f32.gmra.mrb[0].mxu0 %v1226
        %v1795 = vpop.f32.mrb[0].mxu0
        %v1796 = vadd.f32 %v1691, %v1795
        %v1797 = vpop.f32.mrb[0].mxu0
        %v1798 = vadd.f32 %v1695, %v1797
        %1799 = vmatprep.mubr.f32.mxu0 %v1231
        %1800 = vmatmul.mubr.f32.gmra.mrb[0].mxu0 %v1230
        %v1801 = vpop.f32.mrb[0].mxu0
        %v1802 = vadd.f32 %v1691, %v1801
        %v1803 = vpop.f32.mrb[0].mxu0
        %v1804 = vadd.f32 %v1695, %v1803
        %1805 = vmatprep.mubr.f32.mxu0 %v1235
        %1806 = vmatmul.mubr.f32.gmra.mrb[0].mxu0 %v1234
        %v1807 = vpop.f32.mrb[0].mxu0
        %v1808 = vadd.f32 %v1691, %v1807
        %v1809 = vpop.f32.mrb[0].mxu0
        %v1810 = vadd.f32 %v1695, %v1809
        %1811 = vdwg.mxu0
        %1812 = vmatprep.subr.mxu0 %v1463
        %1813 = vmatpush1.msra.mxu0 %v1462
        %1814 = vmatprep.subr.mxu0 %v1470
        %1815 = vmatpush1.msra.mxu0 %v1469
        %1816 = vmatprep.subr.mxu0 %v1477
        %1817 = vmatpush1.msra.mxu0 %v1476
        %1818 = vmatprep.subr.mxu0 %v1484
        %1819 = vmatpush1.msra.mxu0 %v1483
        %1820 = vmatprep.subr.mxu0 %v1491
        %1821 = vmatpush1.msra.mxu0 %v1490
        %1822 = vmatprep.subr.mxu0 %v1498
        %1823 = vmatpush1.msra.mxu0 %v1497
        %1824 = vmatprep.subr.mxu0 %v1505
        %1825 = vmatpush1.msra.mxu0 %v1504
        %1826 = vmatprep.subr.mxu0 %v1512
        %1827 = vmatpush1.msra.mxu0 %v1511
        %1828 = vmatprep.subr.mxu0 %v1519
        %1829 = vmatpush1.msra.mxu0 %v1518
        %1830 = vmatprep.subr.mxu0 %v1526
        %1831 = vmatpush1.msra.mxu0 %v1525
        %1832 = vmatprep.subr.mxu0 %v1533
        %1833 = vmatpush1.msra.mxu0 %v1532
        %1834 = vmatprep.subr.mxu0 %v1540
        %1835 = vmatpush1.msra.mxu0 %v1539
        %1836 = vmatprep.subr.mxu0 %v1547
        %1837 = vmatpush1.msra.mxu0 %v1546
        %1838 = vmatprep.subr.mxu0 %v1554
        %1839 = vmatpush1.msra.mxu0 %v1553
        %1840 = vmatprep.subr.mxu0 %v1561
        %1841 = vmatpush1.msra.mxu0 %v1560
        %1842 = vmatprep.subr.mxu0 %v1568
        %1843 = vmatpush1.msra.mxu0 %v1567
        %1844 = vmatprep.subr.mxu0 %v1575
        %1845 = vmatpush1.msra.mxu0 %v1574
        %1846 = vmatprep.subr.mxu0 %v1582
        %1847 = vmatpush1.msra.mxu0 %v1581
        %1848 = vmatprep.subr.mxu0 %v1589
        %1849 = vmatpush1.msra.mxu0 %v1588
        %1850 = vmatprep.subr.mxu0 %v1596
        %1851 = vmatpush1.msra.mxu0 %v1595
        %1852 = vmatprep.subr.mxu0 %v1603
        %1853 = vmatpush1.msra.mxu0 %v1602
        %1854 = vmatprep.subr.mxu0 %v1610
        %1855 = vmatpush1.msra.mxu0 %v1609
        %1856 = vmatprep.subr.mxu0 %v1617
        %1857 = vmatpush1.msra.mxu0 %v1616
        %1858 = vmatprep.subr.mxu0 %v1624
        %1859 = vmatpush1.msra.mxu0 %v1623
        %1860 = vmatprep.subr.mxu0 %v1631
        %1861 = vmatpush1.msra.mxu0 %v1630
        %1862 = vmatprep.subr.mxu0 %v1638
        %1863 = vmatpush1.msra.mxu0 %v1637
        %1864 = vmatprep.subr.mxu0 %v1645
        %1865 = vmatpush1.msra.mxu0 %v1644
        %1866 = vmatprep.subr.mxu0 %v1652
        %1867 = vmatpush1.msra.mxu0 %v1651
        %1868 = vmatprep.subr.mxu0 %v1659
        %1869 = vmatpush1.msra.mxu0 %v1658
        %1870 = vmatprep.subr.mxu0 %v1666
        %1871 = vmatpush1.msra.mxu0 %v1665
        %1872 = vmatprep.subr.mxu0 %v1673
        %1873 = vmatpush1.msra.mxu0 %v1672
        %1874 = vmatprep.subr.mxu0 %v1680
        %1875 = vmatpush1.msra.mxu0 %v1679
        %1876 = vmatprep.mubr.f32.mxu0 %v1225
        %1877 = vmatmul.mubr.f32.gmra.mrb[0].mxu0 %v1224
        %v1878 = vpop.f32.mrb[0].mxu0
        %v1879 = vadd.f32 %v1790, %v1878
        %v1880 = vpop.f32.mrb[0].mxu0
        %v1881 = vadd.f32 %v1792, %v1880
        %1882 = vmatprep.mubr.f32.mxu0 %v1229
        %1883 = vmatmul.mubr.f32.gmra.mrb[0].mxu0 %v1228
        %v1884 = vpop.f32.mrb[0].mxu0
        %v1885 = vadd.f32 %v1796, %v1884
        %v1886 = vpop.f32.mrb[0].mxu0
        %v1887 = vadd.f32 %v1798, %v1886
        %1888 = vmatprep.mubr.f32.mxu0 %v1233
        %1889 = vmatmul.mubr.f32.gmra.mrb[0].mxu0 %v1232
        %v1890 = vpop.f32.mrb[0].mxu0
        %v1891 = vadd.f32 %v1802, %v1890
        %v1892 = vpop.f32.mrb[0].mxu0
        %v1893 = vadd.f32 %v1804, %v1892
        %1894 = vmatprep.mubr.f32.mxu0 %v1237
        %1895 = vmatmul.mubr.f32.gmra.mrb[0].mxu0 %v1236
        %v1896 = vpop.f32.mrb[0].mxu0
        %v1897 = vadd.f32 %v1808, %v1896
        %v1898 = vpop.f32.mrb[0].mxu0
        %v1899 = vadd.f32 %v1810, %v1898
        %1900 = vdwg.mxu0
        %1901 = vmatprep.subr.mxu0 %v1241
        %1902 = vmatpush1.msra.mxu0 %v1240
        %1903 = vmatprep.subr.mxu0 %v1248
        %1904 = vmatpush1.msra.mxu0 %v1247
        %1905 = vmatprep.subr.mxu0 %v1255
        %1906 = vmatpush1.msra.mxu0 %v1254
        %1907 = vmatprep.subr.mxu0 %v1262
        %1908 = vmatpush1.msra.mxu0 %v1261
        %1909 = vmatprep.subr.mxu0 %v1269
        %1910 = vmatpush1.msra.mxu0 %v1268
        %1911 = vmatprep.subr.mxu0 %v1276
        %1912 = vmatpush1.msra.mxu0 %v1275
        %1913 = vmatprep.subr.mxu0 %v1283
        %1914 = vmatpush1.msra.mxu0 %v1282
        %1915 = vmatprep.subr.mxu0 %v1290
        %1916 = vmatpush1.msra.mxu0 %v1289
        %1917 = vmatprep.subr.mxu0 %v1297
        %1918 = vmatpush1.msra.mxu0 %v1296
        %1919 = vmatprep.subr.mxu0 %v1304
        %1920 = vmatpush1.msra.mxu0 %v1303
        %1921 = vmatprep.subr.mxu0 %v1311
        %1922 = vmatpush1.msra.mxu0 %v1310
        %1923 = vmatprep.subr.mxu0 %v1318
        %1924 = vmatpush1.msra.mxu0 %v1317
        %1925 = vmatprep.subr.mxu0 %v1325
        %1926 = vmatpush1.msra.mxu0 %v1324
        %1927 = vmatprep.subr.mxu0 %v1332
        %1928 = vmatpush1.msra.mxu0 %v1331
        %1929 = vmatprep.subr.mxu0 %v1339
        %1930 = vmatpush1.msra.mxu0 %v1338
        %1931 = vmatprep.subr.mxu0 %v1346
        %1932 = vmatpush1.msra.mxu0 %v1345
        %1933 = vmatprep.subr.mxu0 %v1353
        %1934 = vmatpush1.msra.mxu0 %v1352
        %1935 = vmatprep.subr.mxu0 %v1360
        %1936 = vmatpush1.msra.mxu0 %v1359
        %1937 = vmatprep.subr.mxu0 %v1367
        %1938 = vmatpush1.msra.mxu0 %v1366
        %1939 = vmatprep.subr.mxu0 %v1374
        %1940 = vmatpush1.msra.mxu0 %v1373
        %1941 = vmatprep.subr.mxu0 %v1381
        %1942 = vmatpush1.msra.mxu0 %v1380
        %1943 = vmatprep.subr.mxu0 %v1388
        %1944 = vmatpush1.msra.mxu0 %v1387
        %1945 = vmatprep.subr.mxu0 %v1395
        %1946 = vmatpush1.msra.mxu0 %v1394
        %1947 = vmatprep.subr.mxu0 %v1402
        %1948 = vmatpush1.msra.mxu0 %v1401
        %1949 = vmatprep.subr.mxu0 %v1409
        %1950 = vmatpush1.msra.mxu0 %v1408
        %1951 = vmatprep.subr.mxu0 %v1416
        %1952 = vmatpush1.msra.mxu0 %v1415
        %1953 = vmatprep.subr.mxu0 %v1423
        %1954 = vmatpush1.msra.mxu0 %v1422
        %1955 = vmatprep.subr.mxu0 %v1430
        %1956 = vmatpush1.msra.mxu0 %v1429
        %1957 = vmatprep.subr.mxu0 %v1437
        %1958 = vmatpush1.msra.mxu0 %v1436
        %1959 = vmatprep.subr.mxu0 %v1444
        %1960 = vmatpush1.msra.mxu0 %v1443
        %1961 = vmatprep.subr.mxu0 %v1451
        %1962 = vmatpush1.msra.mxu0 %v1450
        %1963 = vmatprep.subr.mxu0 %v1458
        %1964 = vmatpush1.msra.mxu0 %v1457
        %1965 = vmatprep.mubr.f32.mxu0 %v1223
        %1966 = vmatmul.mubr.f32.gmra.mrb[0].mxu0 %v1222
        %v1967 = vpop.f32.mrb[0].mxu0
        %v1968 = vadd.f32 %v1699, %v1967
        %v1969 = vpop.f32.mrb[0].mxu0
        %v1970 = vadd.f32 %v1703, %v1969
        %1971 = vmatprep.mubr.f32.mxu0 %v1227
        %1972 = vmatmul.mubr.f32.gmra.mrb[0].mxu0 %v1226
        %v1973 = vpop.f32.mrb[0].mxu0
        %v1974 = vadd.f32 %v1699, %v1973
        %v1975 = vpop.f32.mrb[0].mxu0
        %v1976 = vadd.f32 %v1703, %v1975
        %1977 = vmatprep.mubr.f32.mxu0 %v1231
        %1978 = vmatmul.mubr.f32.gmra.mrb[0].mxu0 %v1230
        %v1979 = vpop.f32.mrb[0].mxu0
        %v1980 = vadd.f32 %v1699, %v1979
        %v1981 = vpop.f32.mrb[0].mxu0
        %v1982 = vadd.f32 %v1703, %v1981
        %1983 = vmatprep.mubr.f32.mxu0 %v1235
        %1984 = vmatmul.mubr.f32.gmra.mrb[0].mxu0 %v1234
        %v1985 = vpop.f32.mrb[0].mxu0
        %v1986 = vadd.f32 %v1699, %v1985
        %v1987 = vpop.f32.mrb[0].mxu0
        %v1988 = vadd.f32 %v1703, %v1987
        %1989 = vdwg.mxu0
        %1990 = vmatprep.subr.mxu0 %v1465
        %1991 = vmatpush1.msra.mxu0 %v1464
        %1992 = vmatprep.subr.mxu0 %v1472
        %1993 = vmatpush1.msra.mxu0 %v1471
        %1994 = vmatprep.subr.mxu0 %v1479
        %1995 = vmatpush1.msra.mxu0 %v1478
        %1996 = vmatprep.subr.mxu0 %v1486
        %1997 = vmatpush1.msra.mxu0 %v1485
        %1998 = vmatprep.subr.mxu0 %v1493
        %1999 = vmatpush1.msra.mxu0 %v1492
        %2000 = vmatprep.subr.mxu0 %v1500
        %2001 = vmatpush1.msra.mxu0 %v1499
        %2002 = vmatprep.subr.mxu0 %v1507
        %2003 = vmatpush1.msra.mxu0 %v1506
        %2004 = vmatprep.subr.mxu0 %v1514
        %2005 = vmatpush1.msra.mxu0 %v1513
        %2006 = vmatprep.subr.mxu0 %v1521
        %2007 = vmatpush1.msra.mxu0 %v1520
        %2008 = vmatprep.subr.mxu0 %v1528
        %2009 = vmatpush1.msra.mxu0 %v1527
        %2010 = vmatprep.subr.mxu0 %v1535
        %2011 = vmatpush1.msra.mxu0 %v1534
        %2012 = vmatprep.subr.mxu0 %v1542
        %2013 = vmatpush1.msra.mxu0 %v1541
        %2014 = vmatprep.subr.mxu0 %v1549
        %2015 = vmatpush1.msra.mxu0 %v1548
        %2016 = vmatprep.subr.mxu0 %v1556
        %2017 = vmatpush1.msra.mxu0 %v1555
        %2018 = vmatprep.subr.mxu0 %v1563
        %2019 = vmatpush1.msra.mxu0 %v1562
        %2020 = vmatprep.subr.mxu0 %v1570
        %2021 = vmatpush1.msra.mxu0 %v1569
        %2022 = vmatprep.subr.mxu0 %v1577
        %2023 = vmatpush1.msra.mxu0 %v1576
        %2024 = vmatprep.subr.mxu0 %v1584
        %2025 = vmatpush1.msra.mxu0 %v1583
        %2026 = vmatprep.subr.mxu0 %v1591
        %2027 = vmatpush1.msra.mxu0 %v1590
        %2028 = vmatprep.subr.mxu0 %v1598
        %2029 = vmatpush1.msra.mxu0 %v1597
        %2030 = vmatprep.subr.mxu0 %v1605
        %2031 = vmatpush1.msra.mxu0 %v1604
        %2032 = vmatprep.subr.mxu0 %v1612
        %2033 = vmatpush1.msra.mxu0 %v1611
        %2034 = vmatprep.subr.mxu0 %v1619
        %2035 = vmatpush1.msra.mxu0 %v1618
        %2036 = vmatprep.subr.mxu0 %v1626
        %2037 = vmatpush1.msra.mxu0 %v1625
        %2038 = vmatprep.subr.mxu0 %v1633
        %2039 = vmatpush1.msra.mxu0 %v1632
        %2040 = vmatprep.subr.mxu0 %v1640
        %2041 = vmatpush1.msra.mxu0 %v1639
        %2042 = vmatprep.subr.mxu0 %v1647
        %2043 = vmatpush1.msra.mxu0 %v1646
        %2044 = vmatprep.subr.mxu0 %v1654
        %2045 = vmatpush1.msra.mxu0 %v1653
        %2046 = vmatprep.subr.mxu0 %v1661
        %2047 = vmatpush1.msra.mxu0 %v1660
        %2048 = vmatprep.subr.mxu0 %v1668
        %2049 = vmatpush1.msra.mxu0 %v1667
        %2050 = vmatprep.subr.mxu0 %v1675
        %2051 = vmatpush1.msra.mxu0 %v1674
        %2052 = vmatprep.subr.mxu0 %v1682
        %2053 = vmatpush1.msra.mxu0 %v1681
        %2054 = vmatprep.mubr.f32.mxu0 %v1225
        %2055 = vmatmul.mubr.f32.gmra.mrb[0].mxu0 %v1224
        %v2056 = vpop.f32.mrb[0].mxu0
        %v2057 = vadd.f32 %v1968, %v2056
        %v2058 = vpop.f32.mrb[0].mxu0
        %v2059 = vadd.f32 %v1970, %v2058
        %2060 = vmatprep.mubr.f32.mxu0 %v1229
        %2061 = vmatmul.mubr.f32.gmra.mrb[0].mxu0 %v1228
        %v2062 = vpop.f32.mrb[0].mxu0
        %v2063 = vadd.f32 %v1974, %v2062
        %v2064 = vpop.f32.mrb[0].mxu0
        %v2065 = vadd.f32 %v1976, %v2064
        %2066 = vmatprep.mubr.f32.mxu0 %v1233
        %2067 = vmatmul.mubr.f32.gmra.mrb[0].mxu0 %v1232
        %v2068 = vpop.f32.mrb[0].mxu0
        %v2069 = vadd.f32 %v1980, %v2068
        %v2070 = vpop.f32.mrb[0].mxu0
        %v2071 = vadd.f32 %v1982, %v2070
        %2072 = vmatprep.mubr.f32.mxu0 %v1237
        %2073 = vmatmul.mubr.f32.gmra.mrb[0].mxu0 %v1236
        %v2074 = vpop.f32.mrb[0].mxu0
        %v2075 = vadd.f32 %v1986, %v2074
        %v2076 = vpop.f32.mrb[0].mxu0
        %v2077 = vadd.f32 %v1988, %v2076
        %2078 = vdwg.mxu0
        %2079 = vmatprep.subr.mxu0 %v1243
        %2080 = vmatpush1.msra.mxu0 %v1242
        %2081 = vmatprep.subr.mxu0 %v1250
        %2082 = vmatpush1.msra.mxu0 %v1249
        %2083 = vmatprep.subr.mxu0 %v1257
        %2084 = vmatpush1.msra.mxu0 %v1256
        %2085 = vmatprep.subr.mxu0 %v1264
        %2086 = vmatpush1.msra.mxu0 %v1263
        %2087 = vmatprep.subr.mxu0 %v1271
        %2088 = vmatpush1.msra.mxu0 %v1270
        %2089 = vmatprep.subr.mxu0 %v1278
        %2090 = vmatpush1.msra.mxu0 %v1277
        %2091 = vmatprep.subr.mxu0 %v1285
        %2092 = vmatpush1.msra.mxu0 %v1284
        %2093 = vmatprep.subr.mxu0 %v1292
        %2094 = vmatpush1.msra.mxu0 %v1291
        %2095 = vmatprep.subr.mxu0 %v1299
        %2096 = vmatpush1.msra.mxu0 %v1298
        %2097 = vmatprep.subr.mxu0 %v1306
        %2098 = vmatpush1.msra.mxu0 %v1305
        %2099 = vmatprep.subr.mxu0 %v1313
        %2100 = vmatpush1.msra.mxu0 %v1312
        %2101 = vmatprep.subr.mxu0 %v1320
        %2102 = vmatpush1.msra.mxu0 %v1319
        %2103 = vmatprep.subr.mxu0 %v1327
        %2104 = vmatpush1.msra.mxu0 %v1326
        %2105 = vmatprep.subr.mxu0 %v1334
        %2106 = vmatpush1.msra.mxu0 %v1333
        %2107 = vmatprep.subr.mxu0 %v1341
        %2108 = vmatpush1.msra.mxu0 %v1340
        %2109 = vmatprep.subr.mxu0 %v1348
        %2110 = vmatpush1.msra.mxu0 %v1347
        %2111 = vmatprep.subr.mxu0 %v1355
        %2112 = vmatpush1.msra.mxu0 %v1354
        %2113 = vmatprep.subr.mxu0 %v1362
        %2114 = vmatpush1.msra.mxu0 %v1361
        %2115 = vmatprep.subr.mxu0 %v1369
        %2116 = vmatpush1.msra.mxu0 %v1368
        %2117 = vmatprep.subr.mxu0 %v1376
        %2118 = vmatpush1.msra.mxu0 %v1375
        %2119 = vmatprep.subr.mxu0 %v1383
        %2120 = vmatpush1.msra.mxu0 %v1382
        %2121 = vmatprep.subr.mxu0 %v1390
        %2122 = vmatpush1.msra.mxu0 %v1389
        %2123 = vmatprep.subr.mxu0 %v1397
        %2124 = vmatpush1.msra.mxu0 %v1396
        %2125 = vmatprep.subr.mxu0 %v1404
        %2126 = vmatpush1.msra.mxu0 %v1403
        %2127 = vmatprep.subr.mxu0 %v1411
        %2128 = vmatpush1.msra.mxu0 %v1410
        %2129 = vmatprep.subr.mxu0 %v1418
        %2130 = vmatpush1.msra.mxu0 %v1417
        %2131 = vmatprep.subr.mxu0 %v1425
        %2132 = vmatpush1.msra.mxu0 %v1424
        %2133 = vmatprep.subr.mxu0 %v1432
        %2134 = vmatpush1.msra.mxu0 %v1431
        %2135 = vmatprep.subr.mxu0 %v1439
        %2136 = vmatpush1.msra.mxu0 %v1438
        %2137 = vmatprep.subr.mxu0 %v1446
        %2138 = vmatpush1.msra.mxu0 %v1445
        %2139 = vmatprep.subr.mxu0 %v1453
        %2140 = vmatpush1.msra.mxu0 %v1452
        %2141 = vmatprep.subr.mxu0 %v1460
        %2142 = vmatpush1.msra.mxu0 %v1459
        %2143 = vmatprep.mubr.f32.mxu0 %v1223
        %2144 = vmatmul.mubr.f32.gmra.mrb[0].mxu0 %v1222
        %v2145 = vpop.f32.mrb[0].mxu0
        %v2146 = vadd.f32 %v1707, %v2145
        %v2147 = vpop.f32.mrb[0].mxu0
        %v2148 = vadd.f32 %v1711, %v2147
        %2149 = vmatprep.mubr.f32.mxu0 %v1227
        %2150 = vmatmul.mubr.f32.gmra.mrb[0].mxu0 %v1226
        %v2151 = vpop.f32.mrb[0].mxu0
        %v2152 = vadd.f32 %v1707, %v2151
        %v2153 = vpop.f32.mrb[0].mxu0
        %v2154 = vadd.f32 %v1711, %v2153
        %2155 = vmatprep.mubr.f32.mxu0 %v1231
        %2156 = vmatmul.mubr.f32.gmra.mrb[0].mxu0 %v1230
        %v2157 = vpop.f32.mrb[0].mxu0
        %v2158 = vadd.f32 %v1707, %v2157
        %v2159 = vpop.f32.mrb[0].mxu0
        %v2160 = vadd.f32 %v1711, %v2159
        %2161 = vmatprep.mubr.f32.mxu0 %v1235
        %2162 = vmatmul.mubr.f32.gmra.mrb[0].mxu0 %v1234
        %v2163 = vpop.f32.mrb[0].mxu0
        %v2164 = vadd.f32 %v1707, %v2163
        %v2165 = vpop.f32.mrb[0].mxu0
        %v2166 = vadd.f32 %v1711, %v2165
        %2167 = vdwg.mxu0
        %2168 = vmatprep.subr.mxu0 %v1467
        %2169 = vmatpush1.msra.mxu0 %v1466
        %2170 = vmatprep.subr.mxu0 %v1474
        %2171 = vmatpush1.msra.mxu0 %v1473
        %2172 = vmatprep.subr.mxu0 %v1481
        %2173 = vmatpush1.msra.mxu0 %v1480
        %2174 = vmatprep.subr.mxu0 %v1488
        %2175 = vmatpush1.msra.mxu0 %v1487
        %2176 = vmatprep.subr.mxu0 %v1495
        %2177 = vmatpush1.msra.mxu0 %v1494
        %2178 = vmatprep.subr.mxu0 %v1502
        %2179 = vmatpush1.msra.mxu0 %v1501
        %2180 = vmatprep.subr.mxu0 %v1509
        %2181 = vmatpush1.msra.mxu0 %v1508
        %2182 = vmatprep.subr.mxu0 %v1516
        %2183 = vmatpush1.msra.mxu0 %v1515
        %2184 = vmatprep.subr.mxu0 %v1523
        %2185 = vmatpush1.msra.mxu0 %v1522
        %2186 = vmatprep.subr.mxu0 %v1530
        %2187 = vmatpush1.msra.mxu0 %v1529
        %2188 = vmatprep.subr.mxu0 %v1537
        %2189 = vmatpush1.msra.mxu0 %v1536
        %2190 = vmatprep.subr.mxu0 %v1544
        %2191 = vmatpush1.msra.mxu0 %v1543
        %2192 = vmatprep.subr.mxu0 %v1551
        %2193 = vmatpush1.msra.mxu0 %v1550
        %2194 = vmatprep.subr.mxu0 %v1558
        %2195 = vmatpush1.msra.mxu0 %v1557
        %2196 = vmatprep.subr.mxu0 %v1565
        %2197 = vmatpush1.msra.mxu0 %v1564
        %2198 = vmatprep.subr.mxu0 %v1572
        %2199 = vmatpush1.msra.mxu0 %v1571
        %2200 = vmatprep.subr.mxu0 %v1579
        %2201 = vmatpush1.msra.mxu0 %v1578
        %2202 = vmatprep.subr.mxu0 %v1586
        %2203 = vmatpush1.msra.mxu0 %v1585
        %2204 = vmatprep.subr.mxu0 %v1593
        %2205 = vmatpush1.msra.mxu0 %v1592
        %2206 = vmatprep.subr.mxu0 %v1600
        %2207 = vmatpush1.msra.mxu0 %v1599
        %2208 = vmatprep.subr.mxu0 %v1607
        %2209 = vmatpush1.msra.mxu0 %v1606
        %2210 = vmatprep.subr.mxu0 %v1614
        %2211 = vmatpush1.msra.mxu0 %v1613
        %2212 = vmatprep.subr.mxu0 %v1621
        %2213 = vmatpush1.msra.mxu0 %v1620
        %2214 = vmatprep.subr.mxu0 %v1628
        %2215 = vmatpush1.msra.mxu0 %v1627
        %2216 = vmatprep.subr.mxu0 %v1635
        %2217 = vmatpush1.msra.mxu0 %v1634
        %2218 = vmatprep.subr.mxu0 %v1642
        %2219 = vmatpush1.msra.mxu0 %v1641
        %2220 = vmatprep.subr.mxu0 %v1649
        %2221 = vmatpush1.msra.mxu0 %v1648
        %2222 = vmatprep.subr.mxu0 %v1656
        %2223 = vmatpush1.msra.mxu0 %v1655
        %2224 = vmatprep.subr.mxu0 %v1663
        %2225 = vmatpush1.msra.mxu0 %v1662
        %2226 = vmatprep.subr.mxu0 %v1670
        %2227 = vmatpush1.msra.mxu0 %v1669
        %2228 = vmatprep.subr.mxu0 %v1677
        %2229 = vmatpush1.msra.mxu0 %v1676
        %2230 = vmatprep.subr.mxu0 %v1684
        %2231 = vmatpush1.msra.mxu0 %v1683
        %2232 = vmatprep.mubr.f32.mxu0 %v1225
        %2233 = vmatmul.mubr.f32.gmra.mrb[0].mxu0 %v1224
        %v2234 = vpop.f32.mrb[0].mxu0
        %v2235 = vadd.f32 %v2146, %v2234
        %v2236 = vpop.f32.mrb[0].mxu0
        %v2237 = vadd.f32 %v2148, %v2236
        %2238 = vmatprep.mubr.f32.mxu0 %v1229
        %2239 = vmatmul.mubr.f32.gmra.mrb[0].mxu0 %v1228
        %v2240 = vpop.f32.mrb[0].mxu0
        %v2241 = vadd.f32 %v2152, %v2240
        %v2242 = vpop.f32.mrb[0].mxu0
        %v2243 = vadd.f32 %v2154, %v2242
        %2244 = vmatprep.mubr.f32.mxu0 %v1233
        %2245 = vmatmul.mubr.f32.gmra.mrb[0].mxu0 %v1232
        %v2246 = vpop.f32.mrb[0].mxu0
        %v2247 = vadd.f32 %v2158, %v2246
        %v2248 = vpop.f32.mrb[0].mxu0
        %v2249 = vadd.f32 %v2160, %v2248
        %2250 = vmatprep.mubr.f32.mxu0 %v1237
        %2251 = vmatmul.mubr.f32.gmra.mrb[0].mxu0 %v1236
        %v2252 = vpop.f32.mrb[0].mxu0
        %v2253 = vadd.f32 %v2164, %v2252
        %v2254 = vpop.f32.mrb[0].mxu0
        %v2255 = vadd.f32 %v2166, %v2254
        %2256 = vdwg.mxu0
        %2257 = vmatprep.subr.mxu0 0.0
        %2258 = vmatpush1.msra.mxu0 %v1244
        %2259 = vmatprep.subr.mxu0 0.0
        %2260 = vmatpush1.msra.mxu0 %v1251
        %2261 = vmatprep.subr.mxu0 0.0
        %2262 = vmatpush1.msra.mxu0 %v1258
        %2263 = vmatprep.subr.mxu0 0.0
        %2264 = vmatpush1.msra.mxu0 %v1265
        %2265 = vmatprep.subr.mxu0 0.0
        %2266 = vmatpush1.msra.mxu0 %v1272
        %2267 = vmatprep.subr.mxu0 0.0
        %2268 = vmatpush1.msra.mxu0 %v1279
        %2269 = vmatprep.subr.mxu0 0.0
        %2270 = vmatpush1.msra.mxu0 %v1286
        %2271 = vmatprep.subr.mxu0 0.0
        %2272 = vmatpush1.msra.mxu0 %v1293
        %2273 = vmatprep.subr.mxu0 0.0
        %2274 = vmatpush1.msra.mxu0 %v1300
        %2275 = vmatprep.subr.mxu0 0.0
        %2276 = vmatpush1.msra.mxu0 %v1307
        %2277 = vmatprep.subr.mxu0 0.0
        %2278 = vmatpush1.msra.mxu0 %v1314
        %2279 = vmatprep.subr.mxu0 0.0
        %2280 = vmatpush1.msra.mxu0 %v1321
        %2281 = vmatprep.subr.mxu0 0.0
        %2282 = vmatpush1.msra.mxu0 %v1328
        %2283 = vmatprep.subr.mxu0 0.0
        %2284 = vmatpush1.msra.mxu0 %v1335
        %2285 = vmatprep.subr.mxu0 0.0
        %2286 = vmatpush1.msra.mxu0 %v1342
        %2287 = vmatprep.subr.mxu0 0.0
        %2288 = vmatpush1.msra.mxu0 %v1349
        %2289 = vmatprep.subr.mxu0 0.0
        %2290 = vmatpush1.msra.mxu0 %v1356
        %2291 = vmatprep.subr.mxu0 0.0
        %2292 = vmatpush1.msra.mxu0 %v1363
        %2293 = vmatprep.subr.mxu0 0.0
        %2294 = vmatpush1.msra.mxu0 %v1370
        %2295 = vmatprep.subr.mxu0 0.0
        %2296 = vmatpush1.msra.mxu0 %v1377
        %2297 = vmatprep.subr.mxu0 0.0
        %2298 = vmatpush1.msra.mxu0 %v1384
        %2299 = vmatprep.subr.mxu0 0.0
        %2300 = vmatpush1.msra.mxu0 %v1391
        %2301 = vmatprep.subr.mxu0 0.0
        %2302 = vmatpush1.msra.mxu0 %v1398
        %2303 = vmatprep.subr.mxu0 0.0
        %2304 = vmatpush1.msra.mxu0 %v1405
        %2305 = vmatprep.subr.mxu0 0.0
        %2306 = vmatpush1.msra.mxu0 %v1412
        %2307 = vmatprep.subr.mxu0 0.0
        %2308 = vmatpush1.msra.mxu0 %v1419
        %2309 = vmatprep.subr.mxu0 0.0
        %2310 = vmatpush1.msra.mxu0 %v1426
        %2311 = vmatprep.subr.mxu0 0.0
        %2312 = vmatpush1.msra.mxu0 %v1433
        %2313 = vmatprep.subr.mxu0 0.0
        %2314 = vmatpush1.msra.mxu0 %v1440
        %2315 = vmatprep.subr.mxu0 0.0
        %2316 = vmatpush1.msra.mxu0 %v1447
        %2317 = vmatprep.subr.mxu0 0.0
        %2318 = vmatpush1.msra.mxu0 %v1454
        %2319 = vmatprep.subr.mxu0 0.0
        %2320 = vmatpush1.msra.mxu0 %v1461
        %2321 = vmatprep.mubr.f32.mxu0 %v1223
        %2322 = vmatmul.mubr.f32.gmra.mrb[0].mxu0 %v1222
        %v2323 = vpop.f32.mrb[0].mxu0
        %v2324 = vadd.f32 %v1715, %v2323
        %v2325 = vpop.f32.mrb[0].mxu0
        %2326 = vmatprep.mubr.f32.mxu0 %v1227
        %2327 = vmatmul.mubr.f32.gmra.mrb[0].mxu0 %v1226
        %v2328 = vpop.f32.mrb[0].mxu0
        %v2329 = vadd.f32 %v1715, %v2328
        %v2330 = vpop.f32.mrb[0].mxu0
        %2331 = vmatprep.mubr.f32.mxu0 %v1231
        %2332 = vmatmul.mubr.f32.gmra.mrb[0].mxu0 %v1230
        %v2333 = vpop.f32.mrb[0].mxu0
        %v2334 = vadd.f32 %v1715, %v2333
        %v2335 = vpop.f32.mrb[0].mxu0
        %2336 = vmatprep.mubr.f32.mxu0 %v1235
        %2337 = vmatmul.mubr.f32.gmra.mrb[0].mxu0 %v1234
        %v2338 = vpop.f32.mrb[0].mxu0
        %v2339 = vadd.f32 %v1715, %v2338
        %v2340 = vpop.f32.mrb[0].mxu0
        %2341 = vdwg.mxu0
        %2342 = vmatprep.subr.mxu0 0.0
        %2343 = vmatpush1.msra.mxu0 %v1468
        %2344 = vmatprep.subr.mxu0 0.0
        %2345 = vmatpush1.msra.mxu0 %v1475
        %2346 = vmatprep.subr.mxu0 0.0
        %2347 = vmatpush1.msra.mxu0 %v1482
        %2348 = vmatprep.subr.mxu0 0.0
        %2349 = vmatpush1.msra.mxu0 %v1489
        %2350 = vmatprep.subr.mxu0 0.0
        %2351 = vmatpush1.msra.mxu0 %v1496
        %2352 = vmatprep.subr.mxu0 0.0
        %2353 = vmatpush1.msra.mxu0 %v1503
        %2354 = vmatprep.subr.mxu0 0.0
        %2355 = vmatpush1.msra.mxu0 %v1510
        %2356 = vmatprep.subr.mxu0 0.0
        %2357 = vmatpush1.msra.mxu0 %v1517
        %2358 = vmatprep.subr.mxu0 0.0
        %2359 = vmatpush1.msra.mxu0 %v1524
        %2360 = vmatprep.subr.mxu0 0.0
        %2361 = vmatpush1.msra.mxu0 %v1531
        %2362 = vmatprep.subr.mxu0 0.0
        %2363 = vmatpush1.msra.mxu0 %v1538
        %2364 = vmatprep.subr.mxu0 0.0
        %2365 = vmatpush1.msra.mxu0 %v1545
        %2366 = vmatprep.subr.mxu0 0.0
        %2367 = vmatpush1.msra.mxu0 %v1552
        %2368 = vmatprep.subr.mxu0 0.0
        %2369 = vmatpush1.msra.mxu0 %v1559
        %2370 = vmatprep.subr.mxu0 0.0
        %2371 = vmatpush1.msra.mxu0 %v1566
        %2372 = vmatprep.subr.mxu0 0.0
        %2373 = vmatpush1.msra.mxu0 %v1573
        %2374 = vmatprep.subr.mxu0 0.0
        %2375 = vmatpush1.msra.mxu0 %v1580
        %2376 = vmatprep.subr.mxu0 0.0
        %2377 = vmatpush1.msra.mxu0 %v1587
        %2378 = vmatprep.subr.mxu0 0.0
        %2379 = vmatpush1.msra.mxu0 %v1594
        %2380 = vmatprep.subr.mxu0 0.0
        %2381 = vmatpush1.msra.mxu0 %v1601
        %2382 = vmatprep.subr.mxu0 0.0
        %2383 = vmatpush1.msra.mxu0 %v1608
        %2384 = vmatprep.subr.mxu0 0.0
        %2385 = vmatpush1.msra.mxu0 %v1615
        %2386 = vmatprep.subr.mxu0 0.0
        %2387 = vmatpush1.msra.mxu0 %v1622
        %2388 = vmatprep.subr.mxu0 0.0
        %2389 = vmatpush1.msra.mxu0 %v1629
        %2390 = vmatprep.subr.mxu0 0.0
        %2391 = vmatpush1.msra.mxu0 %v1636
        %2392 = vmatprep.subr.mxu0 0.0
        %2393 = vmatpush1.msra.mxu0 %v1643
        %2394 = vmatprep.subr.mxu0 0.0
        %2395 = vmatpush1.msra.mxu0 %v1650
        %2396 = vmatprep.subr.mxu0 0.0
        %2397 = vmatpush1.msra.mxu0 %v1657
        %2398 = vmatprep.subr.mxu0 0.0
        %2399 = vmatpush1.msra.mxu0 %v1664
        %2400 = vmatprep.subr.mxu0 0.0
        %2401 = vmatpush1.msra.mxu0 %v1671
        %2402 = vmatprep.subr.mxu0 0.0
        %2403 = vmatpush1.msra.mxu0 %v1678
        %2404 = vmatprep.subr.mxu0 0.0
        %2405 = vmatpush1.msra.mxu0 %v1685
        %2406 = vmatprep.mubr.f32.mxu0 %v1225
        %2407 = vmatmul.mubr.f32.gmra.mrb[0].mxu0 %v1224
        %v2408 = vpop.f32.mrb[0].mxu0
        %v2409 = vadd.f32 %v2324, %v2408
        %v2410 = vpop.f32.mrb[0].mxu0
        %2411 = vmatprep.mubr.f32.mxu0 %v1229
        %2412 = vmatmul.mubr.f32.gmra.mrb[0].mxu0 %v1228
        %v2413 = vpop.f32.mrb[0].mxu0
        %v2414 = vadd.f32 %v2329, %v2413
        %v2415 = vpop.f32.mrb[0].mxu0
        %2416 = vmatprep.mubr.f32.mxu0 %v1233
        %2417 = vmatmul.mubr.f32.gmra.mrb[0].mxu0 %v1232
        %v2418 = vpop.f32.mrb[0].mxu0
        %v2419 = vadd.f32 %v2334, %v2418
        %v2420 = vpop.f32.mrb[0].mxu0
        %2421 = vmatprep.mubr.f32.mxu0 %v1237
        %2422 = vmatmul.mubr.f32.gmra.mrb[0].mxu0 %v1236
        %v2423 = vpop.f32.mrb[0].mxu0
        %v2424 = vadd.f32 %v2339, %v2423
        %v2425 = vpop.f32.mrb[0].mxu0
        %2426 = vdwg.mxu0
        %v2427 = vxor.u32 %v1879, 2147483648
        %v2428 = vxor.u32 %v1881, 2147483648
        %v2429 = vxor.u32 %v2057, 2147483648
        %v2430 = vxor.u32 %v2059, 2147483648
        %v2431 = vxor.u32 %v2235, 2147483648
        %v2432 = vxor.u32 %v2237, 2147483648
        %v2433 = vxor.u32 %v2409, 2147483648
        %v2434 = vxor.u32 %v1885, 2147483648
        %v2435 = vxor.u32 %v1887, 2147483648
        %v2436 = vxor.u32 %v2063, 2147483648
        %v2437 = vxor.u32 %v2065, 2147483648
        %v2438 = vxor.u32 %v2241, 2147483648
        %v2439 = vxor.u32 %v2243, 2147483648
        %v2440 = vxor.u32 %v2414, 2147483648
        %v2441 = vxor.u32 %v1891, 2147483648
        %v2442 = vxor.u32 %v1893, 2147483648
        %v2443 = vxor.u32 %v2069, 2147483648
        %v2444 = vxor.u32 %v2071, 2147483648
        %v2445 = vxor.u32 %v2247, 2147483648
        %v2446 = vxor.u32 %v2249, 2147483648
        %v2447 = vxor.u32 %v2419, 2147483648
        %v2448 = vxor.u32 %v1897, 2147483648
        %v2449 = vxor.u32 %v1899, 2147483648
        %v2450 = vxor.u32 %v2075, 2147483648
        %v2451 = vxor.u32 %v2077, 2147483648
        %v2452 = vxor.u32 %v2253, 2147483648
        %v2453 = vxor.u32 %v2255, 2147483648
        %v2454 = vxor.u32 %v2424, 2147483648
        %v2455 = vmul.f32 %v2427, 1.442695
        %v2456 = vpow.pop %v2455
        %v2457 = vmul.f32 %v2428, 1.442695
        %v2458 = vpow.pop %v2457
        %v2459 = vmul.f32 %v2429, 1.442695
        %v2460 = vpow.pop %v2459
        %v2461 = vmul.f32 %v2430, 1.442695
        %v2462 = vpow.pop %v2461
        %v2463 = vmul.f32 %v2431, 1.442695
        %v2464 = vpow.pop %v2463
        %v2465 = vmul.f32 %v2432, 1.442695
        %v2466 = vpow.pop %v2465
        %v2467 = vmul.f32 %v2433, 1.442695
        %v2468 = vpow.pop %v2467
        %v2469 = vmul.f32 %v2434, 1.442695
        %v2470 = vpow.pop %v2469
        %v2471 = vmul.f32 %v2435, 1.442695
        %v2472 = vpow.pop %v2471
        %v2473 = vmul.f32 %v2436, 1.442695
        %v2474 = vpow.pop %v2473
        %v2475 = vmul.f32 %v2437, 1.442695
        %v2476 = vpow.pop %v2475
        %v2477 = vmul.f32 %v2438, 1.442695
        %v2478 = vpow.pop %v2477
        %v2479 = vmul.f32 %v2439, 1.442695
        %v2480 = vpow.pop %v2479
        %v2481 = vmul.f32 %v2440, 1.442695
        %v2482 = vpow.pop %v2481
        %v2483 = vmul.f32 %v2441, 1.442695
        %v2484 = vpow.pop %v2483
        %v2485 = vmul.f32 %v2442, 1.442695
        %v2486 = vpow.pop %v2485
        %v2487 = vmul.f32 %v2443, 1.442695
        %v2488 = vpow.pop %v2487
        %v2489 = vmul.f32 %v2444, 1.442695
        %v2490 = vpow.pop %v2489
        %v2491 = vmul.f32 %v2445, 1.442695
        %v2492 = vpow.pop %v2491
        %v2493 = vmul.f32 %v2446, 1.442695
        %v2494 = vpow.pop %v2493
        %v2495 = vmul.f32 %v2447, 1.442695
        %v2496 = vpow.pop %v2495
        %v2497 = vmul.f32 %v2448, 1.442695
        %v2498 = vpow.pop %v2497
        %v2499 = vmul.f32 %v2449, 1.442695
        %v2500 = vpow.pop %v2499
        %v2501 = vmul.f32 %v2450, 1.442695
        %v2502 = vpow.pop %v2501
        %v2503 = vmul.f32 %v2451, 1.442695
        %v2504 = vpow.pop %v2503
        %v2505 = vmul.f32 %v2452, 1.442695
        %v2506 = vpow.pop %v2505
        %v2507 = vmul.f32 %v2453, 1.442695
        %v2508 = vpow.pop %v2507
        %v2509 = vmul.f32 %v2454, 1.442695
        %v2510 = vpow.pop %v2509
        %v2511 = vadd.f32 %v2456, 1.0
        %v2512 = vadd.f32 %v2458, 1.0
        %v2513 = vadd.f32 %v2460, 1.0
        %v2514 = vadd.f32 %v2462, 1.0
        %v2515 = vadd.f32 %v2464, 1.0
        %v2516 = vadd.f32 %v2466, 1.0
        %v2517 = vadd.f32 %v2468, 1.0
        %v2518 = vadd.f32 %v2470, 1.0
        %v2519 = vadd.f32 %v2472, 1.0
        %v2520 = vadd.f32 %v2474, 1.0
        %v2521 = vadd.f32 %v2476, 1.0
        %v2522 = vadd.f32 %v2478, 1.0
        %v2523 = vadd.f32 %v2480, 1.0
        %v2524 = vadd.f32 %v2482, 1.0
        %v2525 = vadd.f32 %v2484, 1.0
        %v2526 = vadd.f32 %v2486, 1.0
        %v2527 = vadd.f32 %v2488, 1.0
        %v2528 = vadd.f32 %v2490, 1.0
        %v2529 = vadd.f32 %v2492, 1.0
        %v2530 = vadd.f32 %v2494, 1.0
        %v2531 = vadd.f32 %v2496, 1.0
        %v2532 = vadd.f32 %v2498, 1.0
        %v2533 = vadd.f32 %v2500, 1.0
        %v2534 = vadd.f32 %v2502, 1.0
        %v2535 = vadd.f32 %v2504, 1.0
        %v2536 = vadd.f32 %v2506, 1.0
        %v2537 = vadd.f32 %v2508, 1.0
        %v2538 = vadd.f32 %v2510, 1.0
        %v2539 = vrcp.pop %v2511
        %v2540 = vmul.f32 1.0, %v2539
        %v2541 = vrcp.pop %v2512
        %v2542 = vmul.f32 1.0, %v2541
        %v2543 = vrcp.pop %v2513
        %v2544 = vmul.f32 1.0, %v2543
        %v2545 = vrcp.pop %v2514
        %v2546 = vmul.f32 1.0, %v2545
        %v2547 = vrcp.pop %v2515
        %v2548 = vmul.f32 1.0, %v2547
        %v2549 = vrcp.pop %v2516
        %v2550 = vmul.f32 1.0, %v2549
        %v2551 = vrcp.pop %v2517
        %v2552 = vmul.f32 1.0, %v2551
        %v2553 = vrcp.pop %v2518
        %v2554 = vmul.f32 1.0, %v2553
        %v2555 = vrcp.pop %v2519
        %v2556 = vmul.f32 1.0, %v2555
        %v2557 = vrcp.pop %v2520
        %v2558 = vmul.f32 1.0, %v2557
        %v2559 = vrcp.pop %v2521
        %v2560 = vmul.f32 1.0, %v2559
        %v2561 = vrcp.pop %v2522
        %v2562 = vmul.f32 1.0, %v2561
        %v2563 = vrcp.pop %v2523
        %v2564 = vmul.f32 1.0, %v2563
        %v2565 = vrcp.pop %v2524
        %v2566 = vmul.f32 1.0, %v2565
        %v2567 = vrcp.pop %v2525
        %v2568 = vmul.f32 1.0, %v2567
        %v2569 = vrcp.pop %v2526
        %v2570 = vmul.f32 1.0, %v2569
        %v2571 = vrcp.pop %v2527
        %v2572 = vmul.f32 1.0, %v2571
        %v2573 = vrcp.pop %v2528
        %v2574 = vmul.f32 1.0, %v2573
        %v2575 = vrcp.pop %v2529
        %v2576 = vmul.f32 1.0, %v2575
        %v2577 = vrcp.pop %v2530
        %v2578 = vmul.f32 1.0, %v2577
        %v2579 = vrcp.pop %v2531
        %v2580 = vmul.f32 1.0, %v2579
        %v2581 = vrcp.pop %v2532
        %v2582 = vmul.f32 1.0, %v2581
        %v2583 = vrcp.pop %v2533
        %v2584 = vmul.f32 1.0, %v2583
        %v2585 = vrcp.pop %v2534
        %v2586 = vmul.f32 1.0, %v2585
        %v2587 = vrcp.pop %v2535
        %v2588 = vmul.f32 1.0, %v2587
        %v2589 = vrcp.pop %v2536
        %v2590 = vmul.f32 1.0, %v2589
        %v2591 = vrcp.pop %v2537
        %v2592 = vmul.f32 1.0, %v2591
        %v2593 = vrcp.pop %v2538
        %v2594 = vmul.f32 1.0, %v2593
        %2595 = vst [vmem:[%s516] sm:$0xff] %v2540
        %2596 = vst [vmem:[%s516 + $0x8] sm:$0xff] %v2542
        %2597 = vst [vmem:[%s516 + $0x10] sm:$0xff] %v2544
        %2598 = vst [vmem:[%s516 + $0x18] sm:$0xff] %v2546
        %2599 = vst [vmem:[%s516 + $0x20] sm:$0xff] %v2548
        %2600 = vst [vmem:[%s516 + $0x28] sm:$0xff] %v2550
        %vm2601 = vcmask 130048
        %2602 = vst.msk [vmem:[%s516 + $0x30] sm:$0xff] %vm2601, %v2552
        %2603 = vst [vmem:[%s516 + $0x38] sm:$0xff] %v2554
        %2604 = vst [vmem:[%s516 + $0x40] sm:$0xff] %v2556
        %2605 = vst [vmem:[%s516 + $0x48] sm:$0xff] %v2558
        %2606 = vst [vmem:[%s516 + $0x50] sm:$0xff] %v2560
        %2607 = vst [vmem:[%s516 + $0x58] sm:$0xff] %v2562
        %2608 = vst [vmem:[%s516 + $0x60] sm:$0xff] %v2564
        %2609 = vst.msk [vmem:[%s516 + $0x68] sm:$0xff] %vm2601, %v2566
        %2610 = vst [vmem:[%s516 + $0x70] sm:$0xff] %v2568
        %2611 = vst [vmem:[%s516 + $0x78] sm:$0xff] %v2570
        %2612 = vst [vmem:[%s516 + $0x80] sm:$0xff] %v2572
        %2613 = vst [vmem:[%s516 + $0x88] sm:$0xff] %v2574
        %2614 = vst [vmem:[%s516 + $0x90] sm:$0xff] %v2576
        %2615 = vst [vmem:[%s516 + $0x98] sm:$0xff] %v2578
        %2616 = vst.msk [vmem:[%s516 + $0xa0] sm:$0xff] %vm2601, %v2580
        %2617 = vst [vmem:[%s516 + $0xa8] sm:$0xff] %v2582
        %2618 = vst [vmem:[%s516 + $0xb0] sm:$0xff] %v2584
        %2619 = vst [vmem:[%s516 + $0xb8] sm:$0xff] %v2586
        %2620 = vst [vmem:[%s516 + $0xc0] sm:$0xff] %v2588
        %2621 = vst [vmem:[%s516 + $0xc8] sm:$0xff] %v2590
        %2622 = vst [vmem:[%s516 + $0xd0] sm:$0xff] %v2592
        %2623 = vst.msk [vmem:[%s516 + $0xd8] sm:$0xff] %vm2601, %v2594
        %s2624 = sand.u32 %s275, 1
        %s2625 = scalar_lea.sflag [#allocation4], %s2624
        %s2626 = sand.u32 %s275, 1
        %s2627 = smul.addr %s2626, 224
        %s2628 = scalar_lea.vmem [#allocation19], %s2627
        // Predicated region
        $region105: #{decoder_forward.1} parent=63 // pred_check
          %p2629 = pneg %p285
        $region106: #{decoder_forward.1} parent=63 // pred_check_branch
          %2631 = sbr.rel (%p2629) target = $region108
        $region107: #{decoder_forward.1} parent=63 // pred_region
          %s2632 = smul.u32 4, %s31
          %s2634 = ssub.s32 3584, 3584
          %2635 = vsyncadd %s2625, %s2634
          %s2636 = smul.addr %s2632, 7
          %s2637 = smul.addr %s2636, 128
          %s2638 = scalar_lea.hbm %s11, %s2637
          %s2639 = sshll.u32 %s2628, 4
          %s2640 = int_to_ptr.vmem [resolvable:$true] %s2639
          %2645 = dma.vmem_to_hbm [thread:$0]  %s2640, 3584, %s2638, %s2625, 896, 896, 56
        $region108: #{decoder_forward.1} parent=63 // pred_fallthru
          _
      $region64: #{decoder_forward.1} parent=5 // pred_fallthru
        _
      %p2646 = scmp.le.s32.totalorder 2, %s26
      // Predicated region
      $region109: #{decoder_forward.1} parent=5 // pred_check
        %p2647 = pneg %p2646
      $region110: #{decoder_forward.1} parent=5 // pred_check_branch
        %2649 = sbr.rel (%p2647) target = $region112
      $region111: #{decoder_forward.1} parent=5 // pred_region
        %s2650 = ssub.s32 %s26, 2
        // Predicated region
        $region113: #{decoder_forward.1} parent=111 // pred_check
          %p2651 = pneg %p291
        $region114: #{decoder_forward.1} parent=111 // pred_check_branch
          %2653 = sbr.rel (%p2651) target = $region116
        $region115: #{decoder_forward.1} parent=111 // pred_region
          %s2654 = sand.u32 %s276, 1
          %s2655 = scalar_lea.sflag [#allocation4], %s2654
          %s2656 = sand.u32 %s276, 1
          %s2657 = smul.addr %s2656, 224
          %s2658 = scalar_lea.vmem [#allocation19], %s2657
          %2659 = dma.done %s2655, 3584
        $region116: #{decoder_forward.1} parent=111 // pred_fallthru
          _
      $region112: #{decoder_forward.1} parent=5 // pred_fallthru
        _
    $region6: #{decoder_forward.1} parent=1 // loop_footer
      %s30 = sadd.s32 1, %s26
    $region7: #{decoder_forward.1} parent=1 // loop_footer_branch
      %25 = sbr.rel target = $region3
    $region8: #{decoder_forward.1} parent=1 // loop_exit
      _
    %2660 = vsyncpa [#allocation3], 1
    %s2661 = scalar_lea.sflag [#allocation3], 1
    %2662 = vsyncpa %s2661, 1
    %2663 = vsyncpa [#allocation6], 1
    %2664 = vsyncpa [#allocation9], 1
    %2665 = vsyncpa [#allocation12], 1
    %2666 = vsyncpa [#allocation15], 1
    %2667 = vsyncpa [#allocation18], 1
    %2668 = vsyncpa [#allocation4], 1
    %s2669 = scalar_lea.sflag [#allocation4], 1
    %2670 = vsyncpa %s2669, 1

</llo_original>
